<compile_context>
chip_gen: v7x
topology: tpu7x:2x2x1
jax: 0.10.0
libtpu: 0.0.40
codegen_flags: <defaults>
</compile_context>

<pallas_src>
import jax
import jax.numpy as jnp
import numpy as np
from jax.experimental import pallas as pl
from jax.experimental.pallas import tpu as pltpu


def _round_up(x, m):
    return (x + m - 1) // m * m


def _images_per_tile(n, hw):
    """Whole images per lane tile.

    Keeps >= 2 grid steps when n >= 2 (both v7x TensorCores busy), keeps the
    lane tile a multiple of 128 (unmasked full-lane stores), and targets
    ~512 lanes per step to amortize the ~0.35us per-step overhead.
    """
    if hw % 128 != 0:
        return n                      # single full-array tile (always legal)
    ipt = 1
    for c in range(1, n + 1):
        if n % c == 0 and c * hw <= 512 and (n // c >= 2 or n < 2):
            ipt = c
    return ipt


def _pack_layer(wgt, b, cin_pad, cout_pad):
    """(Cout,Cin,3,3)+(Cout,) -> bf16 (9, Cout_pad, Cin_pad), f32 (Cout_pad,1)."""
    co, ci, kh, kw = wgt.shape
    assert kh == 3 and kw == 3, "only 3x3 kernels are fused"
    wp = jnp.zeros((cout_pad, cin_pad, 3, 3), jnp.float32)
    wp = wp.at[:co, :ci].set(wgt.astype(jnp.float32))
    wp = jnp.transpose(wp, (2, 3, 0, 1)).reshape(9, cout_pad, cin_pad)
    bp = jnp.zeros((cout_pad, 1), jnp.float32).at[:co, 0].set(b.astype(jnp.float32))
    return wp.astype(jnp.bfloat16), bp


def _build_masks(dilations, H, W, ipt):
    """Per-(dh,dw) boundary masks over one lane tile (ipt whole images), f32.

    Built with numpy at trace time -> constant kernel input.  ho is taken
    mod H so the masks also zero cross-image bleed when batch is folded onto
    the lane axis.  Returns (mask_rows, {(dh,dw): row}).
    """
    hw = H * W
    lane = np.arange(ipt * hw)
    ho = (lane // W) % H
    wo = lane % W
    rows, row_of = [], {}
    for d in dilations:
        for kh in range(3):
            for kw in range(3):
                dh, dw = (kh - 1) * int(d), (kw - 1) * int(d)
                if (dh == 0 and dw == 0) or (dh, dw) in row_of:
                    continue
                m = np.ones(ipt * hw, np.float32)
                if dh > 0:
                    m *= (ho < H - dh)
                elif dh < 0:
                    m *= (ho >= -dh)
                if dw > 0:
                    m *= (wo < W - dw)
                elif dw < 0:
                    m *= (wo >= -dw)
                row_of[(dh, dw)] = len(rows)
                rows.append(m)
    if not rows:                       # never hit for 3x3 with d >= 1
        rows.append(np.ones(ipt * hw, np.float32))
    return np.stack(rows, axis=0), row_of


def _make_kernel(num_layers, dilations, W, cout_pad, lane_tile, mask_row_of,
                 lrelu_a, out_dtype):
    """Cascade is fully unrolled at trace time (dilations / taps are static)."""

    def kernel(x_ref, mask_ref, *rest):
        w_refs = rest[:num_layers]                 # each (9, Cout_pad, Cin_pad_l) bf16
        b_refs = rest[num_layers:2 * num_layers]   # each (Cout_pad, 1) f32
        o_ref = rest[2 * num_layers]

        xa = x_ref[...].astype(jnp.float32)        # (Cin_pad0, lane_tile)
        acc = None

        for l in range(num_layers):
            d = int(dilations[l])
            y = None
            for kh in range(3):
                for kw in range(3):
                    dh, dw = (kh - 1) * d, (kw - 1) * d
                    t = dh * W + dw                # flat source offset
                    tap = kh * 3 + kw
                    # shifted[:, s] = xa[:, (s + t) % lane_tile]  (XLU rotate).
                    # Wrapped / off-image lanes are zeroed by the tap mask below.
                    sh = xa if t == 0 else pltpu.roll(xa, (-t) % lane_tile, 1)
                    contrib = jnp.dot(
                        w_refs[l][tap],                       # bf16 (Cout, Cin)
                        sh.astype(jnp.bfloat16),              # bf16 (Cin, L)
                        preferred_element_type=jnp.float32)   # f32  (Cout, L)
                    row = mask_row_of.get((dh, dw))
                    if row is not None:
                        # Mask depends only on the output lane -> apply it to the
                        # (Cout, L) contribution (keeps mask math in f32).
                        contrib = contrib * mask_ref[pl.ds(row, 1), :]
                    y = contrib if y is None else y + contrib
            y = y + b_refs[l][...]                 # (Cout_pad, 1) lane-broadcast

            # LeakyReLU + "sum every intermediate".  a = max(y, a*y); acc += y+a
            # is the minimal-VALU form of the fused residual update (4 ops).
            a = jnp.maximum(y, lrelu_a * y)
            s = y + a
            acc = s if acc is None else acc + s
            xa = a

        o_ref[...] = acc.astype(out_dtype)

    return kernel


def dilated_block_forward(x, weights, biases, dilation_values, padding_values,
                          *, lrelu_a=0.01):
    """x: (N, Cin, H, W); weights[l]: (Cout, Cin_l, 3, 3); biases[l]: (Cout,)."""
    n, cin, h, w = x.shape
    hw = h * w
    num_layers = len(weights)
    cout = weights[0].shape[0]

    for d, p in zip(dilation_values, padding_values):
        if int(p) != int(d):
            # forward() sums all intermediates -> every layer must preserve H, W.
            raise NotImplementedError("fused kernel requires padding == dilation")

    cin_pad0 = _round_up(cin, 8)
    cout_pad = _round_up(cout, 8)
    cin_pads = [cin_pad0] + [cout_pad] * (num_layers - 1)

    ipt = _images_per_tile(n, hw)
    lane_tile = ipt * hw
    grid = (n // ipt,)

    # ---- layout plumbing (wrapper only, never inside the kernel) -------------
    x_flat = jnp.pad(x.reshape(n, cin, hw), ((0, 0), (0, cin_pad0 - cin), (0, 0)))
    x_cl = jnp.transpose(x_flat, (1, 0, 2)).reshape(cin_pad0, n * hw)

    packed = [_pack_layer(wt, b, cp, cout_pad)
              for wt, b, cp in zip(weights, biases, cin_pads)]
    w_list = [p[0] for p in packed]
    b_list = [p[1] for p in packed]

    masks_np, mask_row_of = _build_masks(
        [int(d) for d in dilation_values], h, w, ipt)
    masks = jnp.asarray(masks_np)

    kernel = _make_kernel(num_layers, tuple(int(d) for d in dilation_values),
                          w, cout_pad, lane_tile, mask_row_of,
                          float(lrelu_a), x.dtype)

    in_specs = [pl.BlockSpec((cin_pad0, lane_tile), lambda i: (0, i)),
                pl.BlockSpec(masks.shape, lambda i: (0, 0))]
    in_specs += [pl.BlockSpec(wl.shape, lambda i: (0, 0, 0)) for wl in w_list]
    in_specs += [pl.BlockSpec(bl.shape, lambda i: (0, 0)) for bl in b_list]

    flops = 2 * n * hw * sum(cout_pad * 9 * cp for cp in cin_pads)
    bytes_accessed = (4 * x_cl.size + 4 * cout_pad * n * hw + 4 * masks.size
                      + sum(2 * wl.size for wl in w_list)
                      + sum(4 * bl.size for bl in b_list))

    out_cl = pl.pallas_call(
        kernel,
        out_shape=jax.ShapeDtypeStruct((cout_pad, n * hw), x.dtype),
        grid_spec=pltpu.PrefetchScalarGridSpec(
            num_scalar_prefetch=0,
            grid=grid,
            in_specs=in_specs,
            out_specs=pl.BlockSpec((cout_pad, lane_tile), lambda i: (0, i)),
        ),
        compiler_params=pltpu.CompilerParams(
            dimension_semantics=("parallel",)),
        cost_estimate=pl.CostEstimate(
            flops=flops, transcendentals=0, bytes_accessed=bytes_accessed),
    )(x_cl, masks, *w_list, *b_list)

    out = jnp.transpose(out_cl.reshape(cout_pad, n, hw), (1, 0, 2))
    return out[:, :cout].reshape(n, cout, h, w)


# ----------------------------------------------------------------------------
# Pure-JAX reference (independent math path) for the self-check.
# ----------------------------------------------------------------------------
def ref_forward(x, weights, biases, dilations, paddings, lrelu_a):
    acc = None
    a = x
    for wgt, b, d, p in zip(weights, biases, dilations, paddings):
        y = jax.lax.conv_general_dilated(
            a, wgt, window_strides=(1, 1), padding=[(p, p), (p, p)],
            rhs_dilation=(d, d),
            dimension_numbers=("NCHW", "OIHW", "NCHW"),
            precision=jax.lax.Precision.HIGHEST) + b[None, :, None, None]
        z = jnp.where(y >= 0, y, lrelu_a * y)
        acc = (y + z) if acc is None else (acc + y + z)
        a = z
    return acc


if __name__ == "__main__":
    key = jax.random.PRNGKey(0)
    keys = jax.random.split(key, 8)

    # DilatedBlock(ndim=2, input_channels=4, output_channels=8,
    #              dilation_values=[2,4,6], padding_values=[2,4,6])
    N, Cin, Cout, H, W = 2, 4, 8, 16, 16
    dilation_values = [2, 4, 6]
    padding_values = [2, 4, 6]

    x = jax.random.normal(keys[0], (N, Cin, H, W), dtype=jnp.float32)
    weights, biases = [], []
    ci = Cin
    for l in range(len(dilation_values)):
        weights.append(0.15 * jax.random.normal(keys[1 + l], (Cout, ci, 3, 3),
                                                dtype=jnp.float32))
        biases.append(0.1 * jax.random.normal(keys[4 + l], (Cout,),
                                              dtype=jnp.float32))
        ci = Cout

    y = dilated_block_forward(x, weights, biases, dilation_values,
                              padding_values, lrelu_a=0.01)
    y = jax.block_until_ready(y)
    assert y.shape == (N, Cout, H, W), y.shape

    y_ref = ref_forward(x, weights, biases, dilation_values, padding_values, 0.01)
    max_err = float(jnp.max(jnp.abs(y - y_ref)))
    # Kernel runs bf16 MXU operands (f32 accumulation) vs a Precision.HIGHEST
    # f32 reference -> bf16-appropriate tolerances.
    assert jnp.allclose(y, y_ref, atol=7.5e-2, rtol=5e-2), max_err

    print("KERNEL_OK")
</pallas_src>

<mosaic_0001>
module attributes {stable_mosaic.version = 11 : i64} {
  func.func @kernel(%arg0: i32, %arg1: memref<8x256xf32, #tpu.memory_space<vmem>>, %arg2: memref<24x256xf32, #tpu.memory_space<vmem>>, %arg3: memref<9x8x8xbf16, #tpu.memory_space<vmem>>, %arg4: memref<9x8x8xbf16, #tpu.memory_space<vmem>>, %arg5: memref<9x8x8xbf16, #tpu.memory_space<vmem>>, %arg6: memref<8x1xf32, #tpu.memory_space<vmem>>, %arg7: memref<8x1xf32, #tpu.memory_space<vmem>>, %arg8: memref<8x1xf32, #tpu.memory_space<vmem>>, %arg9: memref<8x256xf32, #tpu.memory_space<vmem>>) attributes {dimension_semantics = [#tpu.dimension_semantics<parallel>], iteration_bounds = array<i64: 2>, scalar_prefetch = 0 : i64, scratch_operands = 0 : i64, tpu.core_type = #tpu.core_type<tc>, window_params = [{transform_indices = @transform_0, window_bounds = array<i64: 8, 256>}, {pipeline_mode = #tpu.pipeline_mode<synchronous>, transform_indices = @transform_1, window_bounds = array<i64: 24, 256>}, {pipeline_mode = #tpu.pipeline_mode<synchronous>, transform_indices = @transform_2, window_bounds = array<i64: 9, 8, 8>}, {pipeline_mode = #tpu.pipeline_mode<synchronous>, transform_indices = @transform_3, window_bounds = array<i64: 9, 8, 8>}, {pipeline_mode = #tpu.pipeline_mode<synchronous>, transform_indices = @transform_4, window_bounds = array<i64: 9, 8, 8>}, {pipeline_mode = #tpu.pipeline_mode<synchronous>, transform_indices = @transform_5, window_bounds = array<i64: 8, 1>}, {pipeline_mode = #tpu.pipeline_mode<synchronous>, transform_indices = @transform_6, window_bounds = array<i64: 8, 1>}, {pipeline_mode = #tpu.pipeline_mode<synchronous>, transform_indices = @transform_7, window_bounds = array<i64: 8, 1>}, {transform_indices = @transform_8, window_bounds = array<i64: 8, 256>}]} {
    %c0 = arith.constant 0 : index
    %c0_0 = arith.constant 0 : index
    %0 = vector.load %arg1[%c0, %c0_0] : memref<8x256xf32, #tpu.memory_space<vmem>>, vector<8x256xf32>
    %c34_i32 = arith.constant 34 : i32
    %1 = tpu.dynamic_rotate %0 by %c34_i32 dim 1 : vector<8x256xf32>, i32 -> vector<8x256xf32>
    %c0_1 = arith.constant 0 : index
    %c0_2 = arith.constant 0 : index
    %c0_3 = arith.constant 0 : index
    %2 = vector.load %arg3[%c0_1, %c0_2, %c0_3] : memref<9x8x8xbf16, #tpu.memory_space<vmem>>, vector<1x8x8xbf16>
    %3 = vector.shape_cast %2 : vector<1x8x8xbf16> to vector<8x8xbf16>
    %4 = arith.truncf %1 : vector<8x256xf32> to vector<8x256xbf16>
    %cst = arith.constant dense<0.000000e+00> : vector<8x256xf32>
    %5 = tpu.matmul %3, %4, %cst {dimension_numbers = #tpu.dot_dimension_numbers<[1], [0], [0], [1], [0, 0, 1, 1], [], []>} : vector<8x8xbf16>, vector<8x256xbf16>, vector<8x256xf32> -> vector<8x256xf32>
    %c0_4 = arith.constant 0 : index
    %c0_5 = arith.constant 0 : index
    %6 = vector.load %arg2[%c0_4, %c0_5] : memref<24x256xf32, #tpu.memory_space<vmem>>, vector<1x256xf32>
    %7 = vector.broadcast %6 : vector<1x256xf32> to vector<8x256xf32>
    %8 = arith.mulf %5, %7 : vector<8x256xf32>
    %c32_i32 = arith.constant 32 : i32
    %9 = tpu.dynamic_rotate %0 by %c32_i32 dim 1 : vector<8x256xf32>, i32 -> vector<8x256xf32>
    %c1 = arith.constant 1 : index
    %c0_6 = arith.constant 0 : index
    %c0_7 = arith.constant 0 : index
    %10 = vector.load %arg3[%c1, %c0_6, %c0_7] : memref<9x8x8xbf16, #tpu.memory_space<vmem>>, vector<1x8x8xbf16>
    %11 = vector.shape_cast %10 : vector<1x8x8xbf16> to vector<8x8xbf16>
    %12 = arith.truncf %9 : vector<8x256xf32> to vector<8x256xbf16>
    %cst_8 = arith.constant dense<0.000000e+00> : vector<8x256xf32>
    %13 = tpu.matmul %11, %12, %cst_8 {dimension_numbers = #tpu.dot_dimension_numbers<[1], [0], [0], [1], [0, 0, 1, 1], [], []>} : vector<8x8xbf16>, vector<8x256xbf16>, vector<8x256xf32> -> vector<8x256xf32>
    %c1_9 = arith.constant 1 : index
    %c0_10 = arith.constant 0 : index
    %14 = vector.load %arg2[%c1_9, %c0_10] : memref<24x256xf32, #tpu.memory_space<vmem>>, vector<1x256xf32>
    %15 = vector.broadcast %14 : vector<1x256xf32> to vector<8x256xf32>
    %16 = arith.mulf %13, %15 : vector<8x256xf32>
    %17 = arith.addf %8, %16 : vector<8x256xf32>
    %c30_i32 = arith.constant 30 : i32
    %18 = tpu.dynamic_rotate %0 by %c30_i32 dim 1 : vector<8x256xf32>, i32 -> vector<8x256xf32>
    %c2 = arith.constant 2 : index
    %c0_11 = arith.constant 0 : index
    %c0_12 = arith.constant 0 : index
    %19 = vector.load %arg3[%c2, %c0_11, %c0_12] : memref<9x8x8xbf16, #tpu.memory_space<vmem>>, vector<1x8x8xbf16>
    %20 = vector.shape_cast %19 : vector<1x8x8xbf16> to vector<8x8xbf16>
    %21 = arith.truncf %18 : vector<8x256xf32> to vector<8x256xbf16>
    %cst_13 = arith.constant dense<0.000000e+00> : vector<8x256xf32>
    %22 = tpu.matmul %20, %21, %cst_13 {dimension_numbers = #tpu.dot_dimension_numbers<[1], [0], [0], [1], [0, 0, 1, 1], [], []>} : vector<8x8xbf16>, vector<8x256xbf16>, vector<8x256xf32> -> vector<8x256xf32>
    %c2_14 = arith.constant 2 : index
    %c0_15 = arith.constant 0 : index
    %23 = vector.load %arg2[%c2_14, %c0_15] : memref<24x256xf32, #tpu.memory_space<vmem>>, vector<1x256xf32>
    %24 = vector.broadcast %23 : vector<1x256xf32> to vector<8x256xf32>
    %25 = arith.mulf %22, %24 : vector<8x256xf32>
    %26 = arith.addf %17, %25 : vector<8x256xf32>
    %c2_i32 = arith.constant 2 : i32
    %27 = tpu.dynamic_rotate %0 by %c2_i32 dim 1 : vector<8x256xf32>, i32 -> vector<8x256xf32>
    %c3 = arith.constant 3 : index
    %c0_16 = arith.constant 0 : index
    %c0_17 = arith.constant 0 : index
    %28 = vector.load %arg3[%c3, %c0_16, %c0_17] : memref<9x8x8xbf16, #tpu.memory_space<vmem>>, vector<1x8x8xbf16>
    %29 = vector.shape_cast %28 : vector<1x8x8xbf16> to vector<8x8xbf16>
    %30 = arith.truncf %27 : vector<8x256xf32> to vector<8x256xbf16>
    %cst_18 = arith.constant dense<0.000000e+00> : vector<8x256xf32>
    %31 = tpu.matmul %29, %30, %cst_18 {dimension_numbers = #tpu.dot_dimension_numbers<[1], [0], [0], [1], [0, 0, 1, 1], [], []>} : vector<8x8xbf16>, vector<8x256xbf16>, vector<8x256xf32> -> vector<8x256xf32>
    %c3_19 = arith.constant 3 : index
    %c0_20 = arith.constant 0 : index
    %32 = vector.load %arg2[%c3_19, %c0_20] : memref<24x256xf32, #tpu.memory_space<vmem>>, vector<1x256xf32>
    %33 = vector.broadcast %32 : vector<1x256xf32> to vector<8x256xf32>
    %34 = arith.mulf %31, %33 : vector<8x256xf32>
    %35 = arith.addf %26, %34 : vector<8x256xf32>
    %c4 = arith.constant 4 : index
    %c0_21 = arith.constant 0 : index
    %c0_22 = arith.constant 0 : index
    %36 = vector.load %arg3[%c4, %c0_21, %c0_22] : memref<9x8x8xbf16, #tpu.memory_space<vmem>>, vector<1x8x8xbf16>
    %37 = vector.shape_cast %36 : vector<1x8x8xbf16> to vector<8x8xbf16>
    %38 = arith.truncf %0 : vector<8x256xf32> to vector<8x256xbf16>
    %cst_23 = arith.constant dense<0.000000e+00> : vector<8x256xf32>
    %39 = tpu.matmul %37, %38, %cst_23 {dimension_numbers = #tpu.dot_dimension_numbers<[1], [0], [0], [1], [0, 0, 1, 1], [], []>} : vector<8x8xbf16>, vector<8x256xbf16>, vector<8x256xf32> -> vector<8x256xf32>
    %40 = arith.addf %35, %39 : vector<8x256xf32>
    %c254_i32 = arith.constant 254 : i32
    %41 = tpu.dynamic_rotate %0 by %c254_i32 dim 1 : vector<8x256xf32>, i32 -> vector<8x256xf32>
    %c5 = arith.constant 5 : index
    %c0_24 = arith.constant 0 : index
    %c0_25 = arith.constant 0 : index
    %42 = vector.load %arg3[%c5, %c0_24, %c0_25] : memref<9x8x8xbf16, #tpu.memory_space<vmem>>, vector<1x8x8xbf16>
    %43 = vector.shape_cast %42 : vector<1x8x8xbf16> to vector<8x8xbf16>
    %44 = arith.truncf %41 : vector<8x256xf32> to vector<8x256xbf16>
    %cst_26 = arith.constant dense<0.000000e+00> : vector<8x256xf32>
    %45 = tpu.matmul %43, %44, %cst_26 {dimension_numbers = #tpu.dot_dimension_numbers<[1], [0], [0], [1], [0, 0, 1, 1], [], []>} : vector<8x8xbf16>, vector<8x256xbf16>, vector<8x256xf32> -> vector<8x256xf32>
    %c4_27 = arith.constant 4 : index
    %c0_28 = arith.constant 0 : index
    %46 = vector.load %arg2[%c4_27, %c0_28] : memref<24x256xf32, #tpu.memory_space<vmem>>, vector<1x256xf32>
    %47 = vector.broadcast %46 : vector<1x256xf32> to vector<8x256xf32>
    %48 = arith.mulf %45, %47 : vector<8x256xf32>
    %49 = arith.addf %40, %48 : vector<8x256xf32>
    %c226_i32 = arith.constant 226 : i32
    %50 = tpu.dynamic_rotate %0 by %c226_i32 dim 1 : vector<8x256xf32>, i32 -> vector<8x256xf32>
    %c6 = arith.constant 6 : index
    %c0_29 = arith.constant 0 : index
    %c0_30 = arith.constant 0 : index
    %51 = vector.load %arg3[%c6, %c0_29, %c0_30] : memref<9x8x8xbf16, #tpu.memory_space<vmem>>, vector<1x8x8xbf16>
    %52 = vector.shape_cast %51 : vector<1x8x8xbf16> to vector<8x8xbf16>
    %53 = arith.truncf %50 : vector<8x256xf32> to vector<8x256xbf16>
    %cst_31 = arith.constant dense<0.000000e+00> : vector<8x256xf32>
    %54 = tpu.matmul %52, %53, %cst_31 {dimension_numbers = #tpu.dot_dimension_numbers<[1], [0], [0], [1], [0, 0, 1, 1], [], []>} : vector<8x8xbf16>, vector<8x256xbf16>, vector<8x256xf32> -> vector<8x256xf32>
    %c5_32 = arith.constant 5 : index
    %c0_33 = arith.constant 0 : index
    %55 = vector.load %arg2[%c5_32, %c0_33] : memref<24x256xf32, #tpu.memory_space<vmem>>, vector<1x256xf32>
    %56 = vector.broadcast %55 : vector<1x256xf32> to vector<8x256xf32>
    %57 = arith.mulf %54, %56 : vector<8x256xf32>
    %58 = arith.addf %49, %57 : vector<8x256xf32>
    %c224_i32 = arith.constant 224 : i32
    %59 = tpu.dynamic_rotate %0 by %c224_i32 dim 1 : vector<8x256xf32>, i32 -> vector<8x256xf32>
    %c7 = arith.constant 7 : index
    %c0_34 = arith.constant 0 : index
    %c0_35 = arith.constant 0 : index
    %60 = vector.load %arg3[%c7, %c0_34, %c0_35] : memref<9x8x8xbf16, #tpu.memory_space<vmem>>, vector<1x8x8xbf16>
    %61 = vector.shape_cast %60 : vector<1x8x8xbf16> to vector<8x8xbf16>
    %62 = arith.truncf %59 : vector<8x256xf32> to vector<8x256xbf16>
    %cst_36 = arith.constant dense<0.000000e+00> : vector<8x256xf32>
    %63 = tpu.matmul %61, %62, %cst_36 {dimension_numbers = #tpu.dot_dimension_numbers<[1], [0], [0], [1], [0, 0, 1, 1], [], []>} : vector<8x8xbf16>, vector<8x256xbf16>, vector<8x256xf32> -> vector<8x256xf32>
    %c6_37 = arith.constant 6 : index
    %c0_38 = arith.constant 0 : index
    %64 = vector.load %arg2[%c6_37, %c0_38] : memref<24x256xf32, #tpu.memory_space<vmem>>, vector<1x256xf32>
    %65 = vector.broadcast %64 : vector<1x256xf32> to vector<8x256xf32>
    %66 = arith.mulf %63, %65 : vector<8x256xf32>
    %67 = arith.addf %58, %66 : vector<8x256xf32>
    %c222_i32 = arith.constant 222 : i32
    %68 = tpu.dynamic_rotate %0 by %c222_i32 dim 1 : vector<8x256xf32>, i32 -> vector<8x256xf32>
    %c8 = arith.constant 8 : index
    %c0_39 = arith.constant 0 : index
    %c0_40 = arith.constant 0 : index
    %69 = vector.load %arg3[%c8, %c0_39, %c0_40] : memref<9x8x8xbf16, #tpu.memory_space<vmem>>, vector<1x8x8xbf16>
    %70 = vector.shape_cast %69 : vector<1x8x8xbf16> to vector<8x8xbf16>
    %71 = arith.truncf %68 : vector<8x256xf32> to vector<8x256xbf16>
    %cst_41 = arith.constant dense<0.000000e+00> : vector<8x256xf32>
    %72 = tpu.matmul %70, %71, %cst_41 {dimension_numbers = #tpu.dot_dimension_numbers<[1], [0], [0], [1], [0, 0, 1, 1], [], []>} : vector<8x8xbf16>, vector<8x256xbf16>, vector<8x256xf32> -> vector<8x256xf32>
    %c7_42 = arith.constant 7 : index
    %c0_43 = arith.constant 0 : index
    %73 = vector.load %arg2[%c7_42, %c0_43] : memref<24x256xf32, #tpu.memory_space<vmem>>, vector<1x256xf32>
    %74 = vector.broadcast %73 : vector<1x256xf32> to vector<8x256xf32>
    %75 = arith.mulf %72, %74 : vector<8x256xf32>
    %76 = arith.addf %67, %75 : vector<8x256xf32>
    %c0_44 = arith.constant 0 : index
    %c0_45 = arith.constant 0 : index
    %77 = vector.load %arg6[%c0_44, %c0_45] : memref<8x1xf32, #tpu.memory_space<vmem>>, vector<8x1xf32>
    %78 = vector.broadcast %77 : vector<8x1xf32> to vector<8x256xf32>
    %79 = arith.addf %76, %78 : vector<8x256xf32>
    %cst_46 = arith.constant 0.00999999977 : f32
    %80 = vector.broadcast %cst_46 : f32 to vector<8x256xf32>
    %81 = arith.mulf %80, %79 : vector<8x256xf32>
    %82 = arith.maximumf %79, %81 : vector<8x256xf32>
    %83 = arith.addf %79, %82 : vector<8x256xf32>
    %c68_i32 = arith.constant 68 : i32
    %84 = tpu.dynamic_rotate %82 by %c68_i32 dim 1 : vector<8x256xf32>, i32 -> vector<8x256xf32>
    %c0_47 = arith.constant 0 : index
    %c0_48 = arith.constant 0 : index
    %c0_49 = arith.constant 0 : index
    %85 = vector.load %arg4[%c0_47, %c0_48, %c0_49] : memref<9x8x8xbf16, #tpu.memory_space<vmem>>, vector<1x8x8xbf16>
    %86 = vector.shape_cast %85 : vector<1x8x8xbf16> to vector<8x8xbf16>
    %87 = arith.truncf %84 : vector<8x256xf32> to vector<8x256xbf16>
    %cst_50 = arith.constant dense<0.000000e+00> : vector<8x256xf32>
    %88 = tpu.matmul %86, %87, %cst_50 {dimension_numbers = #tpu.dot_dimension_numbers<[1], [0], [0], [1], [0, 0, 1, 1], [], []>} : vector<8x8xbf16>, vector<8x256xbf16>, vector<8x256xf32> -> vector<8x256xf32>
    %c8_51 = arith.constant 8 : index
    %c0_52 = arith.constant 0 : index
    %89 = vector.load %arg2[%c8_51, %c0_52] : memref<24x256xf32, #tpu.memory_space<vmem>>, vector<1x256xf32>
    %90 = vector.broadcast %89 : vector<1x256xf32> to vector<8x256xf32>
    %91 = arith.mulf %88, %90 : vector<8x256xf32>
    %c64_i32 = arith.constant 64 : i32
    %92 = tpu.dynamic_rotate %82 by %c64_i32 dim 1 : vector<8x256xf32>, i32 -> vector<8x256xf32>
    %c1_53 = arith.constant 1 : index
    %c0_54 = arith.constant 0 : index
    %c0_55 = arith.constant 0 : index
    %93 = vector.load %arg4[%c1_53, %c0_54, %c0_55] : memref<9x8x8xbf16, #tpu.memory_space<vmem>>, vector<1x8x8xbf16>
    %94 = vector.shape_cast %93 : vector<1x8x8xbf16> to vector<8x8xbf16>
    %95 = arith.truncf %92 : vector<8x256xf32> to vector<8x256xbf16>
    %cst_56 = arith.constant dense<0.000000e+00> : vector<8x256xf32>
    %96 = tpu.matmul %94, %95, %cst_56 {dimension_numbers = #tpu.dot_dimension_numbers<[1], [0], [0], [1], [0, 0, 1, 1], [], []>} : vector<8x8xbf16>, vector<8x256xbf16>, vector<8x256xf32> -> vector<8x256xf32>
    %c9 = arith.constant 9 : index
    %c0_57 = arith.constant 0 : index
    %97 = vector.load %arg2[%c9, %c0_57] : memref<24x256xf32, #tpu.memory_space<vmem>>, vector<1x256xf32>
    %98 = vector.broadcast %97 : vector<1x256xf32> to vector<8x256xf32>
    %99 = arith.mulf %96, %98 : vector<8x256xf32>
    %100 = arith.addf %91, %99 : vector<8x256xf32>
    %c60_i32 = arith.constant 60 : i32
    %101 = tpu.dynamic_rotate %82 by %c60_i32 dim 1 : vector<8x256xf32>, i32 -> vector<8x256xf32>
    %c2_58 = arith.constant 2 : index
    %c0_59 = arith.constant 0 : index
    %c0_60 = arith.constant 0 : index
    %102 = vector.load %arg4[%c2_58, %c0_59, %c0_60] : memref<9x8x8xbf16, #tpu.memory_space<vmem>>, vector<1x8x8xbf16>
    %103 = vector.shape_cast %102 : vector<1x8x8xbf16> to vector<8x8xbf16>
    %104 = arith.truncf %101 : vector<8x256xf32> to vector<8x256xbf16>
    %cst_61 = arith.constant dense<0.000000e+00> : vector<8x256xf32>
    %105 = tpu.matmul %103, %104, %cst_61 {dimension_numbers = #tpu.dot_dimension_numbers<[1], [0], [0], [1], [0, 0, 1, 1], [], []>} : vector<8x8xbf16>, vector<8x256xbf16>, vector<8x256xf32> -> vector<8x256xf32>
    %c10 = arith.constant 10 : index
    %c0_62 = arith.constant 0 : index
    %106 = vector.load %arg2[%c10, %c0_62] : memref<24x256xf32, #tpu.memory_space<vmem>>, vector<1x256xf32>
    %107 = vector.broadcast %106 : vector<1x256xf32> to vector<8x256xf32>
    %108 = arith.mulf %105, %107 : vector<8x256xf32>
    %109 = arith.addf %100, %108 : vector<8x256xf32>
    %c4_i32 = arith.constant 4 : i32
    %110 = tpu.dynamic_rotate %82 by %c4_i32 dim 1 : vector<8x256xf32>, i32 -> vector<8x256xf32>
    %c3_63 = arith.constant 3 : index
    %c0_64 = arith.constant 0 : index
    %c0_65 = arith.constant 0 : index
    %111 = vector.load %arg4[%c3_63, %c0_64, %c0_65] : memref<9x8x8xbf16, #tpu.memory_space<vmem>>, vector<1x8x8xbf16>
    %112 = vector.shape_cast %111 : vector<1x8x8xbf16> to vector<8x8xbf16>
    %113 = arith.truncf %110 : vector<8x256xf32> to vector<8x256xbf16>
    %cst_66 = arith.constant dense<0.000000e+00> : vector<8x256xf32>
    %114 = tpu.matmul %112, %113, %cst_66 {dimension_numbers = #tpu.dot_dimension_numbers<[1], [0], [0], [1], [0, 0, 1, 1], [], []>} : vector<8x8xbf16>, vector<8x256xbf16>, vector<8x256xf32> -> vector<8x256xf32>
    %c11 = arith.constant 11 : index
    %c0_67 = arith.constant 0 : index
    %115 = vector.load %arg2[%c11, %c0_67] : memref<24x256xf32, #tpu.memory_space<vmem>>, vector<1x256xf32>
    %116 = vector.broadcast %115 : vector<1x256xf32> to vector<8x256xf32>
    %117 = arith.mulf %114, %116 : vector<8x256xf32>
    %118 = arith.addf %109, %117 : vector<8x256xf32>
    %c4_68 = arith.constant 4 : index
    %c0_69 = arith.constant 0 : index
    %c0_70 = arith.constant 0 : index
    %119 = vector.load %arg4[%c4_68, %c0_69, %c0_70] : memref<9x8x8xbf16, #tpu.memory_space<vmem>>, vector<1x8x8xbf16>
    %120 = vector.shape_cast %119 : vector<1x8x8xbf16> to vector<8x8xbf16>
    %121 = arith.truncf %82 : vector<8x256xf32> to vector<8x256xbf16>
    %cst_71 = arith.constant dense<0.000000e+00> : vector<8x256xf32>
    %122 = tpu.matmul %120, %121, %cst_71 {dimension_numbers = #tpu.dot_dimension_numbers<[1], [0], [0], [1], [0, 0, 1, 1], [], []>} : vector<8x8xbf16>, vector<8x256xbf16>, vector<8x256xf32> -> vector<8x256xf32>
    %123 = arith.addf %118, %122 : vector<8x256xf32>
    %c252_i32 = arith.constant 252 : i32
    %124 = tpu.dynamic_rotate %82 by %c252_i32 dim 1 : vector<8x256xf32>, i32 -> vector<8x256xf32>
    %c5_72 = arith.constant 5 : index
    %c0_73 = arith.constant 0 : index
    %c0_74 = arith.constant 0 : index
    %125 = vector.load %arg4[%c5_72, %c0_73, %c0_74] : memref<9x8x8xbf16, #tpu.memory_space<vmem>>, vector<1x8x8xbf16>
    %126 = vector.shape_cast %125 : vector<1x8x8xbf16> to vector<8x8xbf16>
    %127 = arith.truncf %124 : vector<8x256xf32> to vector<8x256xbf16>
    %cst_75 = arith.constant dense<0.000000e+00> : vector<8x256xf32>
    %128 = tpu.matmul %126, %127, %cst_75 {dimension_numbers = #tpu.dot_dimension_numbers<[1], [0], [0], [1], [0, 0, 1, 1], [], []>} : vector<8x8xbf16>, vector<8x256xbf16>, vector<8x256xf32> -> vector<8x256xf32>
    %c12 = arith.constant 12 : index
    %c0_76 = arith.constant 0 : index
    %129 = vector.load %arg2[%c12, %c0_76] : memref<24x256xf32, #tpu.memory_space<vmem>>, vector<1x256xf32>
    %130 = vector.broadcast %129 : vector<1x256xf32> to vector<8x256xf32>
    %131 = arith.mulf %128, %130 : vector<8x256xf32>
    %132 = arith.addf %123, %131 : vector<8x256xf32>
    %c196_i32 = arith.constant 196 : i32
    %133 = tpu.dynamic_rotate %82 by %c196_i32 dim 1 : vector<8x256xf32>, i32 -> vector<8x256xf32>
    %c6_77 = arith.constant 6 : index
    %c0_78 = arith.constant 0 : index
    %c0_79 = arith.constant 0 : index
    %134 = vector.load %arg4[%c6_77, %c0_78, %c0_79] : memref<9x8x8xbf16, #tpu.memory_space<vmem>>, vector<1x8x8xbf16>
    %135 = vector.shape_cast %134 : vector<1x8x8xbf16> to vector<8x8xbf16>
    %136 = arith.truncf %133 : vector<8x256xf32> to vector<8x256xbf16>
    %cst_80 = arith.constant dense<0.000000e+00> : vector<8x256xf32>
    %137 = tpu.matmul %135, %136, %cst_80 {dimension_numbers = #tpu.dot_dimension_numbers<[1], [0], [0], [1], [0, 0, 1, 1], [], []>} : vector<8x8xbf16>, vector<8x256xbf16>, vector<8x256xf32> -> vector<8x256xf32>
    %c13 = arith.constant 13 : index
    %c0_81 = arith.constant 0 : index
    %138 = vector.load %arg2[%c13, %c0_81] : memref<24x256xf32, #tpu.memory_space<vmem>>, vector<1x256xf32>
    %139 = vector.broadcast %138 : vector<1x256xf32> to vector<8x256xf32>
    %140 = arith.mulf %137, %139 : vector<8x256xf32>
    %141 = arith.addf %132, %140 : vector<8x256xf32>
    %c192_i32 = arith.constant 192 : i32
    %142 = tpu.dynamic_rotate %82 by %c192_i32 dim 1 : vector<8x256xf32>, i32 -> vector<8x256xf32>
    %c7_82 = arith.constant 7 : index
    %c0_83 = arith.constant 0 : index
    %c0_84 = arith.constant 0 : index
    %143 = vector.load %arg4[%c7_82, %c0_83, %c0_84] : memref<9x8x8xbf16, #tpu.memory_space<vmem>>, vector<1x8x8xbf16>
    %144 = vector.shape_cast %143 : vector<1x8x8xbf16> to vector<8x8xbf16>
    %145 = arith.truncf %142 : vector<8x256xf32> to vector<8x256xbf16>
    %cst_85 = arith.constant dense<0.000000e+00> : vector<8x256xf32>
    %146 = tpu.matmul %144, %145, %cst_85 {dimension_numbers = #tpu.dot_dimension_numbers<[1], [0], [0], [1], [0, 0, 1, 1], [], []>} : vector<8x8xbf16>, vector<8x256xbf16>, vector<8x256xf32> -> vector<8x256xf32>
    %c14 = arith.constant 14 : index
    %c0_86 = arith.constant 0 : index
    %147 = vector.load %arg2[%c14, %c0_86] : memref<24x256xf32, #tpu.memory_space<vmem>>, vector<1x256xf32>
    %148 = vector.broadcast %147 : vector<1x256xf32> to vector<8x256xf32>
    %149 = arith.mulf %146, %148 : vector<8x256xf32>
    %150 = arith.addf %141, %149 : vector<8x256xf32>
    %c188_i32 = arith.constant 188 : i32
    %151 = tpu.dynamic_rotate %82 by %c188_i32 dim 1 : vector<8x256xf32>, i32 -> vector<8x256xf32>
    %c8_87 = arith.constant 8 : index
    %c0_88 = arith.constant 0 : index
    %c0_89 = arith.constant 0 : index
    %152 = vector.load %arg4[%c8_87, %c0_88, %c0_89] : memref<9x8x8xbf16, #tpu.memory_space<vmem>>, vector<1x8x8xbf16>
    %153 = vector.shape_cast %152 : vector<1x8x8xbf16> to vector<8x8xbf16>
    %154 = arith.truncf %151 : vector<8x256xf32> to vector<8x256xbf16>
    %cst_90 = arith.constant dense<0.000000e+00> : vector<8x256xf32>
    %155 = tpu.matmul %153, %154, %cst_90 {dimension_numbers = #tpu.dot_dimension_numbers<[1], [0], [0], [1], [0, 0, 1, 1], [], []>} : vector<8x8xbf16>, vector<8x256xbf16>, vector<8x256xf32> -> vector<8x256xf32>
    %c15 = arith.constant 15 : index
    %c0_91 = arith.constant 0 : index
    %156 = vector.load %arg2[%c15, %c0_91] : memref<24x256xf32, #tpu.memory_space<vmem>>, vector<1x256xf32>
    %157 = vector.broadcast %156 : vector<1x256xf32> to vector<8x256xf32>
    %158 = arith.mulf %155, %157 : vector<8x256xf32>
    %159 = arith.addf %150, %158 : vector<8x256xf32>
    %c0_92 = arith.constant 0 : index
    %c0_93 = arith.constant 0 : index
    %160 = vector.load %arg7[%c0_92, %c0_93] : memref<8x1xf32, #tpu.memory_space<vmem>>, vector<8x1xf32>
    %161 = vector.broadcast %160 : vector<8x1xf32> to vector<8x256xf32>
    %162 = arith.addf %159, %161 : vector<8x256xf32>
    %cst_94 = arith.constant 0.00999999977 : f32
    %163 = vector.broadcast %cst_94 : f32 to vector<8x256xf32>
    %164 = arith.mulf %163, %162 : vector<8x256xf32>
    %165 = arith.maximumf %162, %164 : vector<8x256xf32>
    %166 = arith.addf %162, %165 : vector<8x256xf32>
    %167 = arith.addf %83, %166 : vector<8x256xf32>
    %c102_i32 = arith.constant 102 : i32
    %168 = tpu.dynamic_rotate %165 by %c102_i32 dim 1 : vector<8x256xf32>, i32 -> vector<8x256xf32>
    %c0_95 = arith.constant 0 : index
    %c0_96 = arith.constant 0 : index
    %c0_97 = arith.constant 0 : index
    %169 = vector.load %arg5[%c0_95, %c0_96, %c0_97] : memref<9x8x8xbf16, #tpu.memory_space<vmem>>, vector<1x8x8xbf16>
    %170 = vector.shape_cast %169 : vector<1x8x8xbf16> to vector<8x8xbf16>
    %171 = arith.truncf %168 : vector<8x256xf32> to vector<8x256xbf16>
    %cst_98 = arith.constant dense<0.000000e+00> : vector<8x256xf32>
    %172 = tpu.matmul %170, %171, %cst_98 {dimension_numbers = #tpu.dot_dimension_numbers<[1], [0], [0], [1], [0, 0, 1, 1], [], []>} : vector<8x8xbf16>, vector<8x256xbf16>, vector<8x256xf32> -> vector<8x256xf32>
    %c16 = arith.constant 16 : index
    %c0_99 = arith.constant 0 : index
    %173 = vector.load %arg2[%c16, %c0_99] : memref<24x256xf32, #tpu.memory_space<vmem>>, vector<1x256xf32>
    %174 = vector.broadcast %173 : vector<1x256xf32> to vector<8x256xf32>
    %175 = arith.mulf %172, %174 : vector<8x256xf32>
    %c96_i32 = arith.constant 96 : i32
    %176 = tpu.dynamic_rotate %165 by %c96_i32 dim 1 : vector<8x256xf32>, i32 -> vector<8x256xf32>
    %c1_100 = arith.constant 1 : index
    %c0_101 = arith.constant 0 : index
    %c0_102 = arith.constant 0 : index
    %177 = vector.load %arg5[%c1_100, %c0_101, %c0_102] : memref<9x8x8xbf16, #tpu.memory_space<vmem>>, vector<1x8x8xbf16>
    %178 = vector.shape_cast %177 : vector<1x8x8xbf16> to vector<8x8xbf16>
    %179 = arith.truncf %176 : vector<8x256xf32> to vector<8x256xbf16>
    %cst_103 = arith.constant dense<0.000000e+00> : vector<8x256xf32>
    %180 = tpu.matmul %178, %179, %cst_103 {dimension_numbers = #tpu.dot_dimension_numbers<[1], [0], [0], [1], [0, 0, 1, 1], [], []>} : vector<8x8xbf16>, vector<8x256xbf16>, vector<8x256xf32> -> vector<8x256xf32>
    %c17 = arith.constant 17 : index
    %c0_104 = arith.constant 0 : index
    %181 = vector.load %arg2[%c17, %c0_104] : memref<24x256xf32, #tpu.memory_space<vmem>>, vector<1x256xf32>
    %182 = vector.broadcast %181 : vector<1x256xf32> to vector<8x256xf32>
    %183 = arith.mulf %180, %182 : vector<8x256xf32>
    %184 = arith.addf %175, %183 : vector<8x256xf32>
    %c90_i32 = arith.constant 90 : i32
    %185 = tpu.dynamic_rotate %165 by %c90_i32 dim 1 : vector<8x256xf32>, i32 -> vector<8x256xf32>
    %c2_105 = arith.constant 2 : index
    %c0_106 = arith.constant 0 : index
    %c0_107 = arith.constant 0 : index
    %186 = vector.load %arg5[%c2_105, %c0_106, %c0_107] : memref<9x8x8xbf16, #tpu.memory_space<vmem>>, vector<1x8x8xbf16>
    %187 = vector.shape_cast %186 : vector<1x8x8xbf16> to vector<8x8xbf16>
    %188 = arith.truncf %185 : vector<8x256xf32> to vector<8x256xbf16>
    %cst_108 = arith.constant dense<0.000000e+00> : vector<8x256xf32>
    %189 = tpu.matmul %187, %188, %cst_108 {dimension_numbers = #tpu.dot_dimension_numbers<[1], [0], [0], [1], [0, 0, 1, 1], [], []>} : vector<8x8xbf16>, vector<8x256xbf16>, vector<8x256xf32> -> vector<8x256xf32>
    %c18 = arith.constant 18 : index
    %c0_109 = arith.constant 0 : index
    %190 = vector.load %arg2[%c18, %c0_109] : memref<24x256xf32, #tpu.memory_space<vmem>>, vector<1x256xf32>
    %191 = vector.broadcast %190 : vector<1x256xf32> to vector<8x256xf32>
    %192 = arith.mulf %189, %191 : vector<8x256xf32>
    %193 = arith.addf %184, %192 : vector<8x256xf32>
    %c6_i32 = arith.constant 6 : i32
    %194 = tpu.dynamic_rotate %165 by %c6_i32 dim 1 : vector<8x256xf32>, i32 -> vector<8x256xf32>
    %c3_110 = arith.constant 3 : index
    %c0_111 = arith.constant 0 : index
    %c0_112 = arith.constant 0 : index
    %195 = vector.load %arg5[%c3_110, %c0_111, %c0_112] : memref<9x8x8xbf16, #tpu.memory_space<vmem>>, vector<1x8x8xbf16>
    %196 = vector.shape_cast %195 : vector<1x8x8xbf16> to vector<8x8xbf16>
    %197 = arith.truncf %194 : vector<8x256xf32> to vector<8x256xbf16>
    %cst_113 = arith.constant dense<0.000000e+00> : vector<8x256xf32>
    %198 = tpu.matmul %196, %197, %cst_113 {dimension_numbers = #tpu.dot_dimension_numbers<[1], [0], [0], [1], [0, 0, 1, 1], [], []>} : vector<8x8xbf16>, vector<8x256xbf16>, vector<8x256xf32> -> vector<8x256xf32>
    %c19 = arith.constant 19 : index
    %c0_114 = arith.constant 0 : index
    %199 = vector.load %arg2[%c19, %c0_114] : memref<24x256xf32, #tpu.memory_space<vmem>>, vector<1x256xf32>
    %200 = vector.broadcast %199 : vector<1x256xf32> to vector<8x256xf32>
    %201 = arith.mulf %198, %200 : vector<8x256xf32>
    %202 = arith.addf %193, %201 : vector<8x256xf32>
    %c4_115 = arith.constant 4 : index
    %c0_116 = arith.constant 0 : index
    %c0_117 = arith.constant 0 : index
    %203 = vector.load %arg5[%c4_115, %c0_116, %c0_117] : memref<9x8x8xbf16, #tpu.memory_space<vmem>>, vector<1x8x8xbf16>
    %204 = vector.shape_cast %203 : vector<1x8x8xbf16> to vector<8x8xbf16>
    %205 = arith.truncf %165 : vector<8x256xf32> to vector<8x256xbf16>
    %cst_118 = arith.constant dense<0.000000e+00> : vector<8x256xf32>
    %206 = tpu.matmul %204, %205, %cst_118 {dimension_numbers = #tpu.dot_dimension_numbers<[1], [0], [0], [1], [0, 0, 1, 1], [], []>} : vector<8x8xbf16>, vector<8x256xbf16>, vector<8x256xf32> -> vector<8x256xf32>
    %207 = arith.addf %202, %206 : vector<8x256xf32>
    %c250_i32 = arith.constant 250 : i32
    %208 = tpu.dynamic_rotate %165 by %c250_i32 dim 1 : vector<8x256xf32>, i32 -> vector<8x256xf32>
    %c5_119 = arith.constant 5 : index
    %c0_120 = arith.constant 0 : index
    %c0_121 = arith.constant 0 : index
    %209 = vector.load %arg5[%c5_119, %c0_120, %c0_121] : memref<9x8x8xbf16, #tpu.memory_space<vmem>>, vector<1x8x8xbf16>
    %210 = vector.shape_cast %209 : vector<1x8x8xbf16> to vector<8x8xbf16>
    %211 = arith.truncf %208 : vector<8x256xf32> to vector<8x256xbf16>
    %cst_122 = arith.constant dense<0.000000e+00> : vector<8x256xf32>
    %212 = tpu.matmul %210, %211, %cst_122 {dimension_numbers = #tpu.dot_dimension_numbers<[1], [0], [0], [1], [0, 0, 1, 1], [], []>} : vector<8x8xbf16>, vector<8x256xbf16>, vector<8x256xf32> -> vector<8x256xf32>
    %c20 = arith.constant 20 : index
    %c0_123 = arith.constant 0 : index
    %213 = vector.load %arg2[%c20, %c0_123] : memref<24x256xf32, #tpu.memory_space<vmem>>, vector<1x256xf32>
    %214 = vector.broadcast %213 : vector<1x256xf32> to vector<8x256xf32>
    %215 = arith.mulf %212, %214 : vector<8x256xf32>
    %216 = arith.addf %207, %215 : vector<8x256xf32>
    %c166_i32 = arith.constant 166 : i32
    %217 = tpu.dynamic_rotate %165 by %c166_i32 dim 1 : vector<8x256xf32>, i32 -> vector<8x256xf32>
    %c6_124 = arith.constant 6 : index
    %c0_125 = arith.constant 0 : index
    %c0_126 = arith.constant 0 : index
    %218 = vector.load %arg5[%c6_124, %c0_125, %c0_126] : memref<9x8x8xbf16, #tpu.memory_space<vmem>>, vector<1x8x8xbf16>
    %219 = vector.shape_cast %218 : vector<1x8x8xbf16> to vector<8x8xbf16>
    %220 = arith.truncf %217 : vector<8x256xf32> to vector<8x256xbf16>
    %cst_127 = arith.constant dense<0.000000e+00> : vector<8x256xf32>
    %221 = tpu.matmul %219, %220, %cst_127 {dimension_numbers = #tpu.dot_dimension_numbers<[1], [0], [0], [1], [0, 0, 1, 1], [], []>} : vector<8x8xbf16>, vector<8x256xbf16>, vector<8x256xf32> -> vector<8x256xf32>
    %c21 = arith.constant 21 : index
    %c0_128 = arith.constant 0 : index
    %222 = vector.load %arg2[%c21, %c0_128] : memref<24x256xf32, #tpu.memory_space<vmem>>, vector<1x256xf32>
    %223 = vector.broadcast %222 : vector<1x256xf32> to vector<8x256xf32>
    %224 = arith.mulf %221, %223 : vector<8x256xf32>
    %225 = arith.addf %216, %224 : vector<8x256xf32>
    %c160_i32 = arith.constant 160 : i32
    %226 = tpu.dynamic_rotate %165 by %c160_i32 dim 1 : vector<8x256xf32>, i32 -> vector<8x256xf32>
    %c7_129 = arith.constant 7 : index
    %c0_130 = arith.constant 0 : index
    %c0_131 = arith.constant 0 : index
    %227 = vector.load %arg5[%c7_129, %c0_130, %c0_131] : memref<9x8x8xbf16, #tpu.memory_space<vmem>>, vector<1x8x8xbf16>
    %228 = vector.shape_cast %227 : vector<1x8x8xbf16> to vector<8x8xbf16>
    %229 = arith.truncf %226 : vector<8x256xf32> to vector<8x256xbf16>
    %cst_132 = arith.constant dense<0.000000e+00> : vector<8x256xf32>
    %230 = tpu.matmul %228, %229, %cst_132 {dimension_numbers = #tpu.dot_dimension_numbers<[1], [0], [0], [1], [0, 0, 1, 1], [], []>} : vector<8x8xbf16>, vector<8x256xbf16>, vector<8x256xf32> -> vector<8x256xf32>
    %c22 = arith.constant 22 : index
    %c0_133 = arith.constant 0 : index
    %231 = vector.load %arg2[%c22, %c0_133] : memref<24x256xf32, #tpu.memory_space<vmem>>, vector<1x256xf32>
    %232 = vector.broadcast %231 : vector<1x256xf32> to vector<8x256xf32>
    %233 = arith.mulf %230, %232 : vector<8x256xf32>
    %234 = arith.addf %225, %233 : vector<8x256xf32>
    %c154_i32 = arith.constant 154 : i32
    %235 = tpu.dynamic_rotate %165 by %c154_i32 dim 1 : vector<8x256xf32>, i32 -> vector<8x256xf32>
    %c8_134 = arith.constant 8 : index
    %c0_135 = arith.constant 0 : index
    %c0_136 = arith.constant 0 : index
    %236 = vector.load %arg5[%c8_134, %c0_135, %c0_136] : memref<9x8x8xbf16, #tpu.memory_space<vmem>>, vector<1x8x8xbf16>
    %237 = vector.shape_cast %236 : vector<1x8x8xbf16> to vector<8x8xbf16>
    %238 = arith.truncf %235 : vector<8x256xf32> to vector<8x256xbf16>
    %cst_137 = arith.constant dense<0.000000e+00> : vector<8x256xf32>
    %239 = tpu.matmul %237, %238, %cst_137 {dimension_numbers = #tpu.dot_dimension_numbers<[1], [0], [0], [1], [0, 0, 1, 1], [], []>} : vector<8x8xbf16>, vector<8x256xbf16>, vector<8x256xf32> -> vector<8x256xf32>
    %c23 = arith.constant 23 : index
    %c0_138 = arith.constant 0 : index
    %240 = vector.load %arg2[%c23, %c0_138] : memref<24x256xf32, #tpu.memory_space<vmem>>, vector<1x256xf32>
    %241 = vector.broadcast %240 : vector<1x256xf32> to vector<8x256xf32>
    %242 = arith.mulf %239, %241 : vector<8x256xf32>
    %243 = arith.addf %234, %242 : vector<8x256xf32>
    %c0_139 = arith.constant 0 : index
    %c0_140 = arith.constant 0 : index
    %244 = vector.load %arg8[%c0_139, %c0_140] : memref<8x1xf32, #tpu.memory_space<vmem>>, vector<8x1xf32>
    %245 = vector.broadcast %244 : vector<8x1xf32> to vector<8x256xf32>
    %246 = arith.addf %243, %245 : vector<8x256xf32>
    %cst_141 = arith.constant 0.00999999977 : f32
    %247 = vector.broadcast %cst_141 : f32 to vector<8x256xf32>
    %248 = arith.mulf %247, %246 : vector<8x256xf32>
    %249 = arith.maximumf %246, %248 : vector<8x256xf32>
    %250 = arith.addf %246, %249 : vector<8x256xf32>
    %251 = arith.addf %167, %250 : vector<8x256xf32>
    %c0_142 = arith.constant 0 : index
    %c0_143 = arith.constant 0 : index
    %252 = vector.load %arg9[%c0_142, %c0_143] : memref<8x256xf32, #tpu.memory_space<vmem>>, vector<8x256xf32>
    tpu.vector_store %arg9[%c0_142, %c0_143], %251 {strides = array<i32>} : memref<8x256xf32, #tpu.memory_space<vmem>>, vector<8x256xf32>,
    return
  }
  func.func @transform_0(%arg0: i32) -> (i32, i32) {
    %c0_i32 = arith.constant 0 : i32
    %c0_i32_0 = arith.constant 0 : i32
    return %c0_i32, %arg0 : i32, i32
  }
  func.func @transform_1(%arg0: i32) -> (i32, i32) {
    %c0_i32 = arith.constant 0 : i32
    %c0_i32_0 = arith.constant 0 : i32
    %c0_i32_1 = arith.constant 0 : i32
    return %c0_i32, %c0_i32_0 : i32, i32
  }
  func.func @transform_2(%arg0: i32) -> (i32, i32, i32) {
    %c0_i32 = arith.constant 0 : i32
    %c0_i32_0 = arith.constant 0 : i32
    %c0_i32_1 = arith.constant 0 : i32
    %c0_i32_2 = arith.constant 0 : i32
    return %c0_i32, %c0_i32_0, %c0_i32_1 : i32, i32, i32
  }
  func.func @transform_3(%arg0: i32) -> (i32, i32, i32) {
    %c0_i32 = arith.constant 0 : i32
    %c0_i32_0 = arith.constant 0 : i32
    %c0_i32_1 = arith.constant 0 : i32
    %c0_i32_2 = arith.constant 0 : i32
    return %c0_i32, %c0_i32_0, %c0_i32_1 : i32, i32, i32
  }
  func.func @transform_4(%arg0: i32) -> (i32, i32, i32) {
    %c0_i32 = arith.constant 0 : i32
    %c0_i32_0 = arith.constant 0 : i32
    %c0_i32_1 = arith.constant 0 : i32
    %c0_i32_2 = arith.constant 0 : i32
    return %c0_i32, %c0_i32_0, %c0_i32_1 : i32, i32, i32
  }
  func.func @transform_5(%arg0: i32) -> (i32, i32) {
    %c0_i32 = arith.constant 0 : i32
    %c0_i32_0 = arith.constant 0 : i32
    %c0_i32_1 = arith.constant 0 : i32
    return %c0_i32, %c0_i32_0 : i32, i32
  }
  func.func @transform_6(%arg0: i32) -> (i32, i32) {
    %c0_i32 = arith.constant 0 : i32
    %c0_i32_0 = arith.constant 0 : i32
    %c0_i32_1 = arith.constant 0 : i32
    return %c0_i32, %c0_i32_0 : i32, i32
  }
  func.func @transform_7(%arg0: i32) -> (i32, i32) {
    %c0_i32 = arith.constant 0 : i32
    %c0_i32_0 = arith.constant 0 : i32
    %c0_i32_1 = arith.constant 0 : i32
    return %c0_i32, %c0_i32_0 : i32, i32
  }
  func.func @transform_8(%arg0: i32) -> (i32, i32) {
    %c0_i32 = arith.constant 0 : i32
    %c0_i32_0 = arith.constant 0 : i32
    return %c0_i32, %arg0 : i32, i32
  }
}

</mosaic_0001>

<llo_original>
// kernel: tpu_custom_call.1
$region0: #{tpu_custom_call.1}
  #allocation0 [shape = 'u32[]', space=smem, size = 0x4, offset = 0x4, fixed_abs, tag = 'smem constant byte address 0x4 - core index']
  #allocation1 [shape = 'u32[144,128]{1,0:T(1,128)}', space=vmem, size = 0x12000, scoped, tag = 'internal scratch']
  %s0 = inlined_call_operand.vmem [shape: f32[8,512], index: 0, kind: input, shape index: {}]
  %s1 = inlined_call_operand.vmem [shape: f32[24,256], index: 1, kind: input, shape index: {}]
  %s2 = inlined_call_operand.vmem [shape: bf16[9,8,8], index: 2, kind: input, shape index: {}]
  %s3 = inlined_call_operand.vmem [shape: bf16[9,8,8], index: 3, kind: input, shape index: {}]
  %s4 = inlined_call_operand.vmem [shape: bf16[9,8,8], index: 4, kind: input, shape index: {}]
  %s5 = inlined_call_operand.vmem [shape: f32[8,1], index: 5, kind: input, shape index: {}]
  %s6 = inlined_call_operand.vmem [shape: f32[8,1], index: 6, kind: input, shape index: {}]
  %s7 = inlined_call_operand.vmem [shape: f32[8,1], index: 7, kind: input, shape index: {}]
  %s8 = inlined_call_operand.hbm [shape: f32[8,512], index: 8, kind: output, shape index: {}]
  %s9 = sld [smem:[#allocation0]]
  $region65: #{tpu_custom_call.1} parent=0
    _
  %s11 = ssub.s32 1, %s9
  %s12 = scalar_select 0, %s11, %s9
  $region1: #{tpu_custom_call.1} parent=0
    #allocation2 [shape = 'u8[16384]{0}', space=vmem, size = 0x4000, scoped, tag = 'output window, operand 0']
    #allocation3 [shape = 's32[2]{0}', space=sflag, size = 0x8, scoped, tag = 'scoped memory for tpu_custom_call.1']
    %13 = vsyncpa [#allocation3], 0
    %s14 = scalar_lea.sflag [#allocation3], 1
    %15 = vsyncpa %s14, 0
    loop: start=0, step=1, limit=4
    $region2: #{tpu_custom_call.1} parent=1 // loop_pre_header
      _
    $region3: #{tpu_custom_call.1} parent=1 // loop_header
      %s17 = sphi 0, %s21
      %p18 = scmp.ge.s32.totalorder %s17, 4
      %s27 = sphi 0, %s29
      %s30 = sphi 0, %s27
      %s31 = sphi 0, %s30
      %s47 = sphi 0, %s31
      %s51 = sphi 0, %s51
      %s53 = sphi 0, %s51
      %s54 = sphi 0, %s53
      %s68 = sphi 0, %s54
      %s72 = sphi 0, %s72
      %s74 = sphi 0, %s72
      %s75 = sphi 0, %s74
      %s89 = sphi 0, %s75
      %s93 = sphi 0, %s93
      %s95 = sphi 0, %s93
      %s96 = sphi 0, %s95
      %s110 = sphi 0, %s96
      %s114 = sphi 0, %s114
      %s116 = sphi 0, %s114
      %s117 = sphi 0, %s116
      %s131 = sphi 0, %s117
      %s135 = sphi 0, %s135
      %s137 = sphi 0, %s135
      %s138 = sphi 0, %s137
      %s152 = sphi 0, %s138
      %s156 = sphi 0, %s156
      %s158 = sphi 0, %s156
      %s159 = sphi 0, %s158
      %s173 = sphi 0, %s159
      %s177 = sphi 0, %s177
      %s179 = sphi 0, %s177
      %s180 = sphi 0, %s179
      %s194 = sphi 0, %s180
      %s200 = sphi 0, %s202
      %s203 = sphi 0, %s200
      %s204 = sphi 0, %s203
      %s220 = sphi 0, %s204
    $region4: #{tpu_custom_call.1} parent=1 // loop_header_branch
      %20 = sbr.rel (%p18) target = $region8
    $region5: #{tpu_custom_call.1} parent=1 // loop_body
      %s22 = ssub.s32 %s17, 1
      %s23 = ssub.s32 %s17, 2
      %s24 = sadd.s32 %s17, 1
      %s25 = ssub.s32 %s17, %s24
      %p26 = scmp.eq.s32.totalorder %s25, 0
      %s28 = sadd.s32 %s27, 1
      %s29 = scalar_select %p26, %s27, %s28
      %p32 = pneg %p26
      %p33 = scmp.eq.s32.totalorder %s17, 1
      %p34 = por %p32, %p33
      %p35 = scmp.ne.s32.totalorder %s27, %s30
      %p36 = scmp.eq.s32.totalorder %s17, 0
      %p37 = por %p35, %p36
      %p38 = scmp.ne.s32.totalorder %s27, %s30
      %p39 = scmp.eq.s32.totalorder %s22, 1
      %p40 = por %p38, %p39
      %p41 = scmp.ne.s32.totalorder %s30, %s31
      %p42 = scmp.eq.s32.totalorder %s22, 0
      %p43 = por %p41, %p42
      %p44 = scmp.ne.s32.totalorder %s30, %s31
      %p45 = scmp.eq.s32.totalorder %s23, 1
      %p46 = por %p44, %p45
      %p48 = scmp.ne.s32.totalorder %s31, %s47
      %p49 = scmp.eq.s32.totalorder %s23, 0
      %p50 = por %p48, %p49
      %s52 = sadd.s32 %s51, 1
      %p55 = scmp.eq.s32.totalorder %s17, 1
      %p56 = scmp.ne.s32.totalorder %s51, %s53
      %p57 = scmp.eq.s32.totalorder %s17, 0
      %p58 = por %p56, %p57
      %p59 = scmp.ne.s32.totalorder %s51, %s53
      %p60 = scmp.eq.s32.totalorder %s22, 1
      %p61 = por %p59, %p60
      %p62 = scmp.ne.s32.totalorder %s53, %s54
      %p63 = scmp.eq.s32.totalorder %s22, 0
      %p64 = por %p62, %p63
      %p65 = scmp.ne.s32.totalorder %s53, %s54
      %p66 = scmp.eq.s32.totalorder %s23, 1
      %p67 = por %p65, %p66
      %p69 = scmp.ne.s32.totalorder %s54, %s68
      %p70 = scmp.eq.s32.totalorder %s23, 0
      %p71 = por %p69, %p70
      %s73 = sadd.s32 %s72, 1
      %p76 = scmp.eq.s32.totalorder %s17, 1
      %p77 = scmp.ne.s32.totalorder %s72, %s74
      %p78 = scmp.eq.s32.totalorder %s17, 0
      %p79 = por %p77, %p78
      %p80 = scmp.ne.s32.totalorder %s72, %s74
      %p81 = scmp.eq.s32.totalorder %s22, 1
      %p82 = por %p80, %p81
      %p83 = scmp.ne.s32.totalorder %s74, %s75
      %p84 = scmp.eq.s32.totalorder %s22, 0
      %p85 = por %p83, %p84
      %p86 = scmp.ne.s32.totalorder %s74, %s75
      %p87 = scmp.eq.s32.totalorder %s23, 1
      %p88 = por %p86, %p87
      %p90 = scmp.ne.s32.totalorder %s75, %s89
      %p91 = scmp.eq.s32.totalorder %s23, 0
      %p92 = por %p90, %p91
      %s94 = sadd.s32 %s93, 1
      %p97 = scmp.eq.s32.totalorder %s17, 1
      %p98 = scmp.ne.s32.totalorder %s93, %s95
      %p99 = scmp.eq.s32.totalorder %s17, 0
      %p100 = por %p98, %p99
      %p101 = scmp.ne.s32.totalorder %s93, %s95
      %p102 = scmp.eq.s32.totalorder %s22, 1
      %p103 = por %p101, %p102
      %p104 = scmp.ne.s32.totalorder %s95, %s96
      %p105 = scmp.eq.s32.totalorder %s22, 0
      %p106 = por %p104, %p105
      %p107 = scmp.ne.s32.totalorder %s95, %s96
      %p108 = scmp.eq.s32.totalorder %s23, 1
      %p109 = por %p107, %p108
      %p111 = scmp.ne.s32.totalorder %s96, %s110
      %p112 = scmp.eq.s32.totalorder %s23, 0
      %p113 = por %p111, %p112
      %s115 = sadd.s32 %s114, 1
      %p118 = scmp.eq.s32.totalorder %s17, 1
      %p119 = scmp.ne.s32.totalorder %s114, %s116
      %p120 = scmp.eq.s32.totalorder %s17, 0
      %p121 = por %p119, %p120
      %p122 = scmp.ne.s32.totalorder %s114, %s116
      %p123 = scmp.eq.s32.totalorder %s22, 1
      %p124 = por %p122, %p123
      %p125 = scmp.ne.s32.totalorder %s116, %s117
      %p126 = scmp.eq.s32.totalorder %s22, 0
      %p127 = por %p125, %p126
      %p128 = scmp.ne.s32.totalorder %s116, %s117
      %p129 = scmp.eq.s32.totalorder %s23, 1
      %p130 = por %p128, %p129
      %p132 = scmp.ne.s32.totalorder %s117, %s131
      %p133 = scmp.eq.s32.totalorder %s23, 0
      %p134 = por %p132, %p133
      %s136 = sadd.s32 %s135, 1
      %p139 = scmp.eq.s32.totalorder %s17, 1
      %p140 = scmp.ne.s32.totalorder %s135, %s137
      %p141 = scmp.eq.s32.totalorder %s17, 0
      %p142 = por %p140, %p141
      %p143 = scmp.ne.s32.totalorder %s135, %s137
      %p144 = scmp.eq.s32.totalorder %s22, 1
      %p145 = por %p143, %p144
      %p146 = scmp.ne.s32.totalorder %s137, %s138
      %p147 = scmp.eq.s32.totalorder %s22, 0
      %p148 = por %p146, %p147
      %p149 = scmp.ne.s32.totalorder %s137, %s138
      %p150 = scmp.eq.s32.totalorder %s23, 1
      %p151 = por %p149, %p150
      %p153 = scmp.ne.s32.totalorder %s138, %s152
      %p154 = scmp.eq.s32.totalorder %s23, 0
      %p155 = por %p153, %p154
      %s157 = sadd.s32 %s156, 1
      %p160 = scmp.eq.s32.totalorder %s17, 1
      %p161 = scmp.ne.s32.totalorder %s156, %s158
      %p162 = scmp.eq.s32.totalorder %s17, 0
      %p163 = por %p161, %p162
      %p164 = scmp.ne.s32.totalorder %s156, %s158
      %p165 = scmp.eq.s32.totalorder %s22, 1
      %p166 = por %p164, %p165
      %p167 = scmp.ne.s32.totalorder %s158, %s159
      %p168 = scmp.eq.s32.totalorder %s22, 0
      %p169 = por %p167, %p168
      %p170 = scmp.ne.s32.totalorder %s158, %s159
      %p171 = scmp.eq.s32.totalorder %s23, 1
      %p172 = por %p170, %p171
      %p174 = scmp.ne.s32.totalorder %s159, %s173
      %p175 = scmp.eq.s32.totalorder %s23, 0
      %p176 = por %p174, %p175
      %s178 = sadd.s32 %s177, 1
      %p181 = scmp.eq.s32.totalorder %s17, 1
      %p182 = scmp.ne.s32.totalorder %s177, %s179
      %p183 = scmp.eq.s32.totalorder %s17, 0
      %p184 = por %p182, %p183
      %p185 = scmp.ne.s32.totalorder %s177, %s179
      %p186 = scmp.eq.s32.totalorder %s22, 1
      %p187 = por %p185, %p186
      %p188 = scmp.ne.s32.totalorder %s179, %s180
      %p189 = scmp.eq.s32.totalorder %s22, 0
      %p190 = por %p188, %p189
      %p191 = scmp.ne.s32.totalorder %s179, %s180
      %p192 = scmp.eq.s32.totalorder %s23, 1
      %p193 = por %p191, %p192
      %p195 = scmp.ne.s32.totalorder %s180, %s194
      %p196 = scmp.eq.s32.totalorder %s23, 0
      %p197 = por %p195, %p196
      %s198 = ssub.s32 %s17, %s24
      %p199 = scmp.eq.s32.totalorder %s198, 0
      %s201 = sadd.s32 %s200, 1
      %s202 = scalar_select %p199, %s200, %s201
      %p205 = pneg %p199
      %p206 = scmp.eq.s32.totalorder %s17, 1
      %p207 = por %p205, %p206
      %p208 = scmp.ne.s32.totalorder %s200, %s203
      %p209 = scmp.eq.s32.totalorder %s17, 0
      %p210 = por %p208, %p209
      %p211 = scmp.ne.s32.totalorder %s200, %s203
      %p212 = scmp.eq.s32.totalorder %s22, 1
      %p213 = por %p211, %p212
      %p214 = scmp.ne.s32.totalorder %s203, %s204
      %p215 = scmp.eq.s32.totalorder %s22, 0
      %p216 = por %p214, %p215
      %p217 = scmp.ne.s32.totalorder %s203, %s204
      %p218 = scmp.eq.s32.totalorder %s23, 1
      %p219 = por %p217, %p218
      %p221 = scmp.ne.s32.totalorder %s204, %s220
      %p222 = scmp.eq.s32.totalorder %s23, 0
      %p223 = por %p221, %p222
      %p224 = scmp.le.s32.totalorder 1, %s17
      %p225 = scmp.lt.s32.totalorder %s17, 3
      %p226 = pnand %p224, %p225
      %p227 = pneg %p226
      // Predicated region
      $region9: #{tpu_custom_call.1} parent=5 // pred_check
        _
      $region10: #{tpu_custom_call.1} parent=5 // pred_check_branch
        %229 = sbr.rel (%p226) target = $region12
      $region11: #{tpu_custom_call.1} parent=5 // pred_region
        %s230 = ssub.s32 %s17, 1
        // Predicated region
        $region13: #{tpu_custom_call.1} parent=11 // pred_check
          %p231 = pneg %p64
        $region14: #{tpu_custom_call.1} parent=11 // pred_check_branch
          %233 = sbr.rel (%p231) target = $region16
        $region15: #{tpu_custom_call.1} parent=11 // pred_region
          _
        $region16: #{tpu_custom_call.1} parent=11 // pred_fallthru
          _
        // Predicated region
        $region17: #{tpu_custom_call.1} parent=11 // pred_check
          %p234 = pneg %p85
        $region18: #{tpu_custom_call.1} parent=11 // pred_check_branch
          %236 = sbr.rel (%p234) target = $region20
        $region19: #{tpu_custom_call.1} parent=11 // pred_region
          _
        $region20: #{tpu_custom_call.1} parent=11 // pred_fallthru
          _
        // Predicated region
        $region21: #{tpu_custom_call.1} parent=11 // pred_check
          %p237 = pneg %p106
        $region22: #{tpu_custom_call.1} parent=11 // pred_check_branch
          %239 = sbr.rel (%p237) target = $region24
        $region23: #{tpu_custom_call.1} parent=11 // pred_region
          _
        $region24: #{tpu_custom_call.1} parent=11 // pred_fallthru
          _
        // Predicated region
        $region25: #{tpu_custom_call.1} parent=11 // pred_check
          %p240 = pneg %p127
        $region26: #{tpu_custom_call.1} parent=11 // pred_check_branch
          %242 = sbr.rel (%p240) target = $region28
        $region27: #{tpu_custom_call.1} parent=11 // pred_region
          _
        $region28: #{tpu_custom_call.1} parent=11 // pred_fallthru
          _
        // Predicated region
        $region29: #{tpu_custom_call.1} parent=11 // pred_check
          %p243 = pneg %p148
        $region30: #{tpu_custom_call.1} parent=11 // pred_check_branch
          %245 = sbr.rel (%p243) target = $region32
        $region31: #{tpu_custom_call.1} parent=11 // pred_region
          _
        $region32: #{tpu_custom_call.1} parent=11 // pred_fallthru
          _
        // Predicated region
        $region33: #{tpu_custom_call.1} parent=11 // pred_check
          %p246 = pneg %p169
        $region34: #{tpu_custom_call.1} parent=11 // pred_check_branch
          %248 = sbr.rel (%p246) target = $region36
        $region35: #{tpu_custom_call.1} parent=11 // pred_region
          _
        $region36: #{tpu_custom_call.1} parent=11 // pred_fallthru
          _
        // Predicated region
        $region37: #{tpu_custom_call.1} parent=11 // pred_check
          %p249 = pneg %p190
        $region38: #{tpu_custom_call.1} parent=11 // pred_check_branch
          %251 = sbr.rel (%p249) target = $region40
        $region39: #{tpu_custom_call.1} parent=11 // pred_region
          _
        $region40: #{tpu_custom_call.1} parent=11 // pred_fallthru
          _
      $region12: #{tpu_custom_call.1} parent=5 // pred_fallthru
        _
      %p252 = scmp.lt.s32.totalorder %s17, 2
      // Predicated region
      $region41: #{tpu_custom_call.1} parent=5 // pred_check
        %p253 = pneg %p252
      $region42: #{tpu_custom_call.1} parent=5 // pred_check_branch
        %255 = sbr.rel (%p253) target = $region44
      $region43: #{tpu_custom_call.1} parent=5 // pred_region
        // Predicated region
        $region45: #{tpu_custom_call.1} parent=43 // pred_check
          %p256 = pneg %p37
        $region46: #{tpu_custom_call.1} parent=43 // pred_check_branch
          %258 = sbr.rel (%p256) target = $region48
        $region47: #{tpu_custom_call.1} parent=43 // pred_region
          %s259 = smul.u32 2, %s17
          %p260 = scmp.lt.s32.totalorder %s259, 3
          %s261 = scalar_select %p260, %s259, 3
          %s262 = smul.addr %s261, 8
          %s263 = scalar_lea.vmem %s0, %s262
          %s264 = smul.u32 2, %s17
        $region48: #{tpu_custom_call.1} parent=43 // pred_fallthru
          _
      $region44: #{tpu_custom_call.1} parent=5 // pred_fallthru
        _
      %p265 = scmp.le.s32.totalorder 1, %s17
      %p266 = scmp.lt.s32.totalorder %s17, 3
      %p267 = pnand %p265, %p266
      %p268 = pneg %p267
      // Predicated region
      $region49: #{tpu_custom_call.1} parent=5 // pred_check
        _
      $region50: #{tpu_custom_call.1} parent=5 // pred_check_branch
        %270 = sbr.rel (%p267) target = $region52
      $region51: #{tpu_custom_call.1} parent=5 // pred_region
        %s271 = ssub.s32 %s17, 1
        %s272 = smul.u32 2, %s22
        %p273 = scmp.lt.s32.totalorder %s272, 3
        %s274 = scalar_select %p273, %s272, 3
        %s275 = smul.addr %s274, 8
        %s276 = scalar_lea.vmem %s0, %s275
        %p277 = pneg %p43
        %p278 = pneg %p40
        %p279 = pneg %p64
        %p280 = pneg %p61
        %p281 = pneg %p85
        %p282 = pneg %p82
        %p283 = pneg %p106
        %p284 = pneg %p103
        %p285 = pneg %p127
        %p286 = pneg %p124
        %p287 = pneg %p148
        %p288 = pneg %p145
        %p289 = pneg %p169
        %p290 = pneg %p166
        %p291 = pneg %p190
        %p292 = pneg %p187
        %p293 = pneg %p216
        %p294 = pneg %p213
        %s295 = sand.u32 %s203, 1
        %s296 = scalar_lea.sflag [#allocation3], %s295
        %s297 = sand.u32 %s203, 1
        %s298 = smul.addr %s297, 16
        %s299 = scalar_lea.vmem [#allocation2], %s298
        %s300 = smul.u32 2, %s22
        %p301 = scmp.lt.s32.totalorder %s300, 3
        %s302 = scalar_select %p301, %s300, 3
        %s303 = smul.addr %s302, 8
        %s304 = scalar_lea.vmem %s0, %s303
        %s305 = smul.u32 2, %s22
        %s306 = smul.u32 2, %s22
        %v308 = vld [vmem:[%s304] sm:$0xff]
        %v309 = vld [vmem:[%s304 + $0x8] sm:$0xff]
        %310 = vrot.lane.b32.xlu0 %v308, 34
        %v311 = vpop.permute.xlu0 %310
        %312 = vrot.lane.b32.xlu0 %v309, 34
        %v313 = vpop.permute.xlu0 %312
        %v314 = vlaneseq
        %v315 = vand.u32 %v314, 127
        %vm316 = vcmp.lt.s32.totalorder %v315, 34
        %v317 = vsel %vm316, %v311, %v313
        %v318 = vsel %vm316, %v313, %v311
        %v319 = vld [vmem:[%s2] sm:$0xf]
        %v320 = vpack.c.bf16 %v318, %v318
        %v321 = vpack.c.bf16 %v317, %v317
        %vm322 = vcmask 64512
        %v324 = vsel %vm322, %v319, 0
        %vm326 = vcmask 1043456
        %v328 = vsel %vm326, %v320, 0
        %v331 = vsel %vm326, %v321, 0
        %333 = vmatprep.subr.bf16.mxu0 %v331
        %334 = vmatpush1.bf16.msra.mxu0 %v328
        %335 = vmatprep.subr.bf16.mxu0 0
        %336 = vmatpush1.bf16.msra.mxu0 0
        %337 = vmatprep.subr.bf16.mxu0 0
        %338 = vmatpush1.bf16.msra.mxu0 0
        %339 = vmatprep.subr.bf16.mxu0 0
        %340 = vmatpush1.bf16.msra.mxu0 0
        %341 = vmatprep.subr.bf16.mxu0 0
        %342 = vmatpush1.bf16.msra.mxu0 0
        %343 = vmatprep.subr.bf16.mxu0 0
        %344 = vmatpush1.bf16.msra.mxu0 0
        %345 = vmatprep.subr.bf16.mxu0 0
        %346 = vmatpush1.bf16.msra.mxu0 0
        %347 = vmatprep.subr.bf16.mxu0 0
        %348 = vmatpush1.bf16.msra.mxu0 0
        %349 = vmatprep.subr.bf16.mxu0 0
        %350 = vmatpush1.bf16.msra.mxu0 0
        %351 = vmatprep.subr.bf16.mxu0 0
        %352 = vmatpush1.bf16.msra.mxu0 0
        %353 = vmatprep.subr.bf16.mxu0 0
        %354 = vmatpush1.bf16.msra.mxu0 0
        %355 = vmatprep.subr.bf16.mxu0 0
        %356 = vmatpush1.bf16.msra.mxu0 0
        %357 = vmatprep.subr.bf16.mxu0 0
        %358 = vmatpush1.bf16.msra.mxu0 0
        %359 = vmatprep.subr.bf16.mxu0 0
        %360 = vmatpush1.bf16.msra.mxu0 0
        %361 = vmatprep.subr.bf16.mxu0 0
        %362 = vmatpush1.bf16.msra.mxu0 0
        %363 = vmatprep.subr.bf16.mxu0 0
        %364 = vmatpush1.bf16.msra.mxu0 0
        %365 = vmatprep.mubr.bf16.mxu0 0
        %366 = vmatmul.mubr.bf16.gmra.mrb[0].mxu0 %v324
        %v367 = vpop.f32.mrb[0].mxu0
        %v368 = vadd.f32 0.0, %v367
        %v369 = vpop.f32.mrb[0].mxu0
        %v370 = vadd.f32 0.0, %v369
        %v371 = vpop.f32.mrb[0].mxu0
        %v372 = vpop.f32.mrb[0].mxu0
        %373 = vdwg.mxu0
        %v374 = vld [vmem:[%s1] ss:$8 sm:$0x3]
        %v376 = vlaneseq
        %v377 = vshrl.u32 %v376, 7
        %v378 = vsub.s32 0, %v377
        %v379 = vrot.slane %v374, %v378
        %v380 = vlaneseq
        %v381 = vshrl.u32 %v380, 7
        %v382 = vsub.s32 1, %v381
        %v383 = vrot.slane %v374, %v382
        %v386 = vmul.f32 %v368, %v379
        %v387 = vmul.f32 %v370, %v383
        %388 = vrot.lane.b32.xlu0 %v308, 32
        %v389 = vpop.permute.xlu0 %388
        %390 = vrot.lane.b32.xlu0 %v309, 32
        %v391 = vpop.permute.xlu0 %390
        %vm392 = vcmp.lt.s32.totalorder %v315, 32
        %v393 = vsel %vm392, %v389, %v391
        %v394 = vsel %vm392, %v391, %v389
        %s395 = scalar_lea.vmem %s2, 4
        %v396 = vld [vmem:[%s395] sm:$0xf]
        %v397 = vpack.c.bf16 %v394, %v394
        %v398 = vpack.c.bf16 %v393, %v393
        %v400 = vsel %vm322, %v396, 0
        %v403 = vsel %vm326, %v397, 0
        %v406 = vsel %vm326, %v398, 0
        %408 = vmatprep.subr.bf16.mxu0 %v406
        %409 = vmatpush1.bf16.msra.mxu0 %v403
        %410 = vmatprep.subr.bf16.mxu0 0
        %411 = vmatpush1.bf16.msra.mxu0 0
        %412 = vmatprep.subr.bf16.mxu0 0
        %413 = vmatpush1.bf16.msra.mxu0 0
        %414 = vmatprep.subr.bf16.mxu0 0
        %415 = vmatpush1.bf16.msra.mxu0 0
        %416 = vmatprep.subr.bf16.mxu0 0
        %417 = vmatpush1.bf16.msra.mxu0 0
        %418 = vmatprep.subr.bf16.mxu0 0
        %419 = vmatpush1.bf16.msra.mxu0 0
        %420 = vmatprep.subr.bf16.mxu0 0
        %421 = vmatpush1.bf16.msra.mxu0 0
        %422 = vmatprep.subr.bf16.mxu0 0
        %423 = vmatpush1.bf16.msra.mxu0 0
        %424 = vmatprep.subr.bf16.mxu0 0
        %425 = vmatpush1.bf16.msra.mxu0 0
        %426 = vmatprep.subr.bf16.mxu0 0
        %427 = vmatpush1.bf16.msra.mxu0 0
        %428 = vmatprep.subr.bf16.mxu0 0
        %429 = vmatpush1.bf16.msra.mxu0 0
        %430 = vmatprep.subr.bf16.mxu0 0
        %431 = vmatpush1.bf16.msra.mxu0 0
        %432 = vmatprep.subr.bf16.mxu0 0
        %433 = vmatpush1.bf16.msra.mxu0 0
        %434 = vmatprep.subr.bf16.mxu0 0
        %435 = vmatpush1.bf16.msra.mxu0 0
        %436 = vmatprep.subr.bf16.mxu0 0
        %437 = vmatpush1.bf16.msra.mxu0 0
        %438 = vmatprep.subr.bf16.mxu0 0
        %439 = vmatpush1.bf16.msra.mxu0 0
        %440 = vmatprep.mubr.bf16.mxu0 0
        %441 = vmatmul.mubr.bf16.gmra.mrb[0].mxu0 %v400
        %v442 = vpop.f32.mrb[0].mxu0
        %v443 = vadd.f32 0.0, %v442
        %v444 = vpop.f32.mrb[0].mxu0
        %v445 = vadd.f32 0.0, %v444
        %v446 = vpop.f32.mrb[0].mxu0
        %v447 = vpop.f32.mrb[0].mxu0
        %448 = vdwg.mxu0
        %s449 = scalar_lea.vmem %s1, 1
        %v450 = vld [vmem:[%s449] ss:$8 sm:$0x3]
        %v452 = vlaneseq
        %v453 = vshrl.u32 %v452, 7
        %v454 = vsub.s32 0, %v453
        %v455 = vrot.slane %v450, %v454
        %v456 = vlaneseq
        %v457 = vshrl.u32 %v456, 7
        %v458 = vsub.s32 1, %v457
        %v459 = vrot.slane %v450, %v458
        %v462 = vmul.f32 %v443, %v455
        %v463 = vmul.f32 %v445, %v459
        %v464 = vadd.f32 %v386, %v462
        %v465 = vadd.f32 %v387, %v463
        %466 = vrot.lane.b32.xlu0 %v308, 30
        %v467 = vpop.permute.xlu0 %466
        %468 = vrot.lane.b32.xlu0 %v309, 30
        %v469 = vpop.permute.xlu0 %468
        %vm470 = vcmp.lt.s32.totalorder %v315, 30
        %v471 = vsel %vm470, %v467, %v469
        %v472 = vsel %vm470, %v469, %v467
        %s473 = scalar_lea.vmem %s2, 8
        %v474 = vld [vmem:[%s473] sm:$0xf]
        %v475 = vpack.c.bf16 %v472, %v472
        %v476 = vpack.c.bf16 %v471, %v471
        %v478 = vsel %vm322, %v474, 0
        %v481 = vsel %vm326, %v475, 0
        %v484 = vsel %vm326, %v476, 0
        %486 = vmatprep.subr.bf16.mxu0 %v484
        %487 = vmatpush1.bf16.msra.mxu0 %v481
        %488 = vmatprep.subr.bf16.mxu0 0
        %489 = vmatpush1.bf16.msra.mxu0 0
        %490 = vmatprep.subr.bf16.mxu0 0
        %491 = vmatpush1.bf16.msra.mxu0 0
        %492 = vmatprep.subr.bf16.mxu0 0
        %493 = vmatpush1.bf16.msra.mxu0 0
        %494 = vmatprep.subr.bf16.mxu0 0
        %495 = vmatpush1.bf16.msra.mxu0 0
        %496 = vmatprep.subr.bf16.mxu0 0
        %497 = vmatpush1.bf16.msra.mxu0 0
        %498 = vmatprep.subr.bf16.mxu0 0
        %499 = vmatpush1.bf16.msra.mxu0 0
        %500 = vmatprep.subr.bf16.mxu0 0
        %501 = vmatpush1.bf16.msra.mxu0 0
        %502 = vmatprep.subr.bf16.mxu0 0
        %503 = vmatpush1.bf16.msra.mxu0 0
        %504 = vmatprep.subr.bf16.mxu0 0
        %505 = vmatpush1.bf16.msra.mxu0 0
        %506 = vmatprep.subr.bf16.mxu0 0
        %507 = vmatpush1.bf16.msra.mxu0 0
        %508 = vmatprep.subr.bf16.mxu0 0
        %509 = vmatpush1.bf16.msra.mxu0 0
        %510 = vmatprep.subr.bf16.mxu0 0
        %511 = vmatpush1.bf16.msra.mxu0 0
        %512 = vmatprep.subr.bf16.mxu0 0
        %513 = vmatpush1.bf16.msra.mxu0 0
        %514 = vmatprep.subr.bf16.mxu0 0
        %515 = vmatpush1.bf16.msra.mxu0 0
        %516 = vmatprep.subr.bf16.mxu0 0
        %517 = vmatpush1.bf16.msra.mxu0 0
        %518 = vmatprep.mubr.bf16.mxu0 0
        %519 = vmatmul.mubr.bf16.gmra.mrb[0].mxu0 %v478
        %v520 = vpop.f32.mrb[0].mxu0
        %v521 = vadd.f32 0.0, %v520
        %v522 = vpop.f32.mrb[0].mxu0
        %v523 = vadd.f32 0.0, %v522
        %v524 = vpop.f32.mrb[0].mxu0
        %v525 = vpop.f32.mrb[0].mxu0
        %526 = vdwg.mxu0
        %s527 = scalar_lea.vmem %s1, 2
        %v528 = vld [vmem:[%s527] ss:$8 sm:$0x3]
        %v530 = vlaneseq
        %v531 = vshrl.u32 %v530, 7
        %v532 = vsub.s32 0, %v531
        %v533 = vrot.slane %v528, %v532
        %v534 = vlaneseq
        %v535 = vshrl.u32 %v534, 7
        %v536 = vsub.s32 1, %v535
        %v537 = vrot.slane %v528, %v536
        %v540 = vmul.f32 %v521, %v533
        %v541 = vmul.f32 %v523, %v537
        %v542 = vadd.f32 %v464, %v540
        %v543 = vadd.f32 %v465, %v541
        %544 = vrot.lane.b32.xlu0 %v308, 2
        %v545 = vpop.permute.xlu0 %544
        %546 = vrot.lane.b32.xlu0 %v309, 2
        %v547 = vpop.permute.xlu0 %546
        %vm548 = vcmp.lt.s32.totalorder %v315, 2
        %v549 = vsel %vm548, %v545, %v547
        %v550 = vsel %vm548, %v547, %v545
        %s551 = scalar_lea.vmem %s2, 12
        %v552 = vld [vmem:[%s551] sm:$0xf]
        %v553 = vpack.c.bf16 %v550, %v550
        %v554 = vpack.c.bf16 %v549, %v549
        %v556 = vsel %vm322, %v552, 0
        %v559 = vsel %vm326, %v553, 0
        %v562 = vsel %vm326, %v554, 0
        %564 = vmatprep.subr.bf16.mxu0 %v562
        %565 = vmatpush1.bf16.msra.mxu0 %v559
        %566 = vmatprep.subr.bf16.mxu0 0
        %567 = vmatpush1.bf16.msra.mxu0 0
        %568 = vmatprep.subr.bf16.mxu0 0
        %569 = vmatpush1.bf16.msra.mxu0 0
        %570 = vmatprep.subr.bf16.mxu0 0
        %571 = vmatpush1.bf16.msra.mxu0 0
        %572 = vmatprep.subr.bf16.mxu0 0
        %573 = vmatpush1.bf16.msra.mxu0 0
        %574 = vmatprep.subr.bf16.mxu0 0
        %575 = vmatpush1.bf16.msra.mxu0 0
        %576 = vmatprep.subr.bf16.mxu0 0
        %577 = vmatpush1.bf16.msra.mxu0 0
        %578 = vmatprep.subr.bf16.mxu0 0
        %579 = vmatpush1.bf16.msra.mxu0 0
        %580 = vmatprep.subr.bf16.mxu0 0
        %581 = vmatpush1.bf16.msra.mxu0 0
        %582 = vmatprep.subr.bf16.mxu0 0
        %583 = vmatpush1.bf16.msra.mxu0 0
        %584 = vmatprep.subr.bf16.mxu0 0
        %585 = vmatpush1.bf16.msra.mxu0 0
        %586 = vmatprep.subr.bf16.mxu0 0
        %587 = vmatpush1.bf16.msra.mxu0 0
        %588 = vmatprep.subr.bf16.mxu0 0
        %589 = vmatpush1.bf16.msra.mxu0 0
        %590 = vmatprep.subr.bf16.mxu0 0
        %591 = vmatpush1.bf16.msra.mxu0 0
        %592 = vmatprep.subr.bf16.mxu0 0
        %593 = vmatpush1.bf16.msra.mxu0 0
        %594 = vmatprep.subr.bf16.mxu0 0
        %595 = vmatpush1.bf16.msra.mxu0 0
        %596 = vmatprep.mubr.bf16.mxu0 0
        %597 = vmatmul.mubr.bf16.gmra.mrb[0].mxu0 %v556
        %v598 = vpop.f32.mrb[0].mxu0
        %v599 = vadd.f32 0.0, %v598
        %v600 = vpop.f32.mrb[0].mxu0
        %v601 = vadd.f32 0.0, %v600
        %v602 = vpop.f32.mrb[0].mxu0
        %v603 = vpop.f32.mrb[0].mxu0
        %604 = vdwg.mxu0
        %s605 = scalar_lea.vmem %s1, 3
        %v606 = vld [vmem:[%s605] ss:$8 sm:$0x3]
        %v608 = vlaneseq
        %v609 = vshrl.u32 %v608, 7
        %v610 = vsub.s32 0, %v609
        %v611 = vrot.slane %v606, %v610
        %v612 = vlaneseq
        %v613 = vshrl.u32 %v612, 7
        %v614 = vsub.s32 1, %v613
        %v615 = vrot.slane %v606, %v614
        %v618 = vmul.f32 %v599, %v611
        %v619 = vmul.f32 %v601, %v615
        %v620 = vadd.f32 %v542, %v618
        %v621 = vadd.f32 %v543, %v619
        %s622 = scalar_lea.vmem %s2, 16
        %v623 = vld [vmem:[%s622] sm:$0xf]
        %v624 = vpack.c.bf16 %v308, %v308
        %v625 = vpack.c.bf16 %v309, %v309
        %v627 = vsel %vm322, %v623, 0
        %v630 = vsel %vm326, %v624, 0
        %v633 = vsel %vm326, %v625, 0
        %635 = vmatprep.subr.bf16.mxu0 %v633
        %636 = vmatpush1.bf16.msra.mxu0 %v630
        %637 = vmatprep.subr.bf16.mxu0 0
        %638 = vmatpush1.bf16.msra.mxu0 0
        %639 = vmatprep.subr.bf16.mxu0 0
        %640 = vmatpush1.bf16.msra.mxu0 0
        %641 = vmatprep.subr.bf16.mxu0 0
        %642 = vmatpush1.bf16.msra.mxu0 0
        %643 = vmatprep.subr.bf16.mxu0 0
        %644 = vmatpush1.bf16.msra.mxu0 0
        %645 = vmatprep.subr.bf16.mxu0 0
        %646 = vmatpush1.bf16.msra.mxu0 0
        %647 = vmatprep.subr.bf16.mxu0 0
        %648 = vmatpush1.bf16.msra.mxu0 0
        %649 = vmatprep.subr.bf16.mxu0 0
        %650 = vmatpush1.bf16.msra.mxu0 0
        %651 = vmatprep.subr.bf16.mxu0 0
        %652 = vmatpush1.bf16.msra.mxu0 0
        %653 = vmatprep.subr.bf16.mxu0 0
        %654 = vmatpush1.bf16.msra.mxu0 0
        %655 = vmatprep.subr.bf16.mxu0 0
        %656 = vmatpush1.bf16.msra.mxu0 0
        %657 = vmatprep.subr.bf16.mxu0 0
        %658 = vmatpush1.bf16.msra.mxu0 0
        %659 = vmatprep.subr.bf16.mxu0 0
        %660 = vmatpush1.bf16.msra.mxu0 0
        %661 = vmatprep.subr.bf16.mxu0 0
        %662 = vmatpush1.bf16.msra.mxu0 0
        %663 = vmatprep.subr.bf16.mxu0 0
        %664 = vmatpush1.bf16.msra.mxu0 0
        %665 = vmatprep.subr.bf16.mxu0 0
        %666 = vmatpush1.bf16.msra.mxu0 0
        %667 = vmatprep.mubr.bf16.mxu0 0
        %668 = vmatmul.mubr.bf16.gmra.mrb[0].mxu0 %v627
        %v669 = vpop.f32.mrb[0].mxu0
        %v670 = vadd.f32 0.0, %v669
        %v671 = vpop.f32.mrb[0].mxu0
        %v672 = vadd.f32 0.0, %v671
        %v673 = vpop.f32.mrb[0].mxu0
        %v674 = vpop.f32.mrb[0].mxu0
        %675 = vdwg.mxu0
        %v676 = vadd.f32 %v620, %v670
        %v677 = vadd.f32 %v621, %v672
        %678 = vrot.lane.b32.xlu0 %v308, 126
        %v679 = vpop.permute.xlu0 %678
        %680 = vrot.lane.b32.xlu0 %v309, 126
        %v681 = vpop.permute.xlu0 %680
        %vm682 = vcmp.lt.s32.totalorder %v315, 126
        %v683 = vsel %vm682, %v679, %v681
        %v684 = vsel %vm682, %v681, %v679
        %s685 = scalar_lea.vmem %s2, 20
        %v686 = vld [vmem:[%s685] sm:$0xf]
        %v687 = vpack.c.bf16 %v683, %v683
        %v688 = vpack.c.bf16 %v684, %v684
        %v690 = vsel %vm322, %v686, 0
        %v693 = vsel %vm326, %v687, 0
        %v696 = vsel %vm326, %v688, 0
        %698 = vmatprep.subr.bf16.mxu0 %v696
        %699 = vmatpush1.bf16.msra.mxu0 %v693
        %700 = vmatprep.subr.bf16.mxu0 0
        %701 = vmatpush1.bf16.msra.mxu0 0
        %702 = vmatprep.subr.bf16.mxu0 0
        %703 = vmatpush1.bf16.msra.mxu0 0
        %704 = vmatprep.subr.bf16.mxu0 0
        %705 = vmatpush1.bf16.msra.mxu0 0
        %706 = vmatprep.subr.bf16.mxu0 0
        %707 = vmatpush1.bf16.msra.mxu0 0
        %708 = vmatprep.subr.bf16.mxu0 0
        %709 = vmatpush1.bf16.msra.mxu0 0
        %710 = vmatprep.subr.bf16.mxu0 0
        %711 = vmatpush1.bf16.msra.mxu0 0
        %712 = vmatprep.subr.bf16.mxu0 0
        %713 = vmatpush1.bf16.msra.mxu0 0
        %714 = vmatprep.subr.bf16.mxu0 0
        %715 = vmatpush1.bf16.msra.mxu0 0
        %716 = vmatprep.subr.bf16.mxu0 0
        %717 = vmatpush1.bf16.msra.mxu0 0
        %718 = vmatprep.subr.bf16.mxu0 0
        %719 = vmatpush1.bf16.msra.mxu0 0
        %720 = vmatprep.subr.bf16.mxu0 0
        %721 = vmatpush1.bf16.msra.mxu0 0
        %722 = vmatprep.subr.bf16.mxu0 0
        %723 = vmatpush1.bf16.msra.mxu0 0
        %724 = vmatprep.subr.bf16.mxu0 0
        %725 = vmatpush1.bf16.msra.mxu0 0
        %726 = vmatprep.subr.bf16.mxu0 0
        %727 = vmatpush1.bf16.msra.mxu0 0
        %728 = vmatprep.subr.bf16.mxu0 0
        %729 = vmatpush1.bf16.msra.mxu0 0
        %730 = vmatprep.mubr.bf16.mxu0 0
        %731 = vmatmul.mubr.bf16.gmra.mrb[0].mxu0 %v690
        %v732 = vpop.f32.mrb[0].mxu0
        %v733 = vadd.f32 0.0, %v732
        %v734 = vpop.f32.mrb[0].mxu0
        %v735 = vadd.f32 0.0, %v734
        %v736 = vpop.f32.mrb[0].mxu0
        %v737 = vpop.f32.mrb[0].mxu0
        %738 = vdwg.mxu0
        %s739 = scalar_lea.vmem %s1, 4
        %v740 = vld [vmem:[%s739] ss:$8 sm:$0x3]
        %v742 = vlaneseq
        %v743 = vshrl.u32 %v742, 7
        %v744 = vsub.s32 0, %v743
        %v745 = vrot.slane %v740, %v744
        %v746 = vlaneseq
        %v747 = vshrl.u32 %v746, 7
        %v748 = vsub.s32 1, %v747
        %v749 = vrot.slane %v740, %v748
        %v752 = vmul.f32 %v733, %v745
        %v753 = vmul.f32 %v735, %v749
        %v754 = vadd.f32 %v676, %v752
        %v755 = vadd.f32 %v677, %v753
        %756 = vrot.lane.b32.xlu0 %v308, 98
        %v757 = vpop.permute.xlu0 %756
        %758 = vrot.lane.b32.xlu0 %v309, 98
        %v759 = vpop.permute.xlu0 %758
        %vm760 = vcmp.lt.s32.totalorder %v315, 98
        %v761 = vsel %vm760, %v757, %v759
        %v762 = vsel %vm760, %v759, %v757
        %s763 = scalar_lea.vmem %s2, 24
        %v764 = vld [vmem:[%s763] sm:$0xf]
        %v765 = vpack.c.bf16 %v761, %v761
        %v766 = vpack.c.bf16 %v762, %v762
        %v768 = vsel %vm322, %v764, 0
        %v771 = vsel %vm326, %v765, 0
        %v774 = vsel %vm326, %v766, 0
        %776 = vmatprep.subr.bf16.mxu0 %v774
        %777 = vmatpush1.bf16.msra.mxu0 %v771
        %778 = vmatprep.subr.bf16.mxu0 0
        %779 = vmatpush1.bf16.msra.mxu0 0
        %780 = vmatprep.subr.bf16.mxu0 0
        %781 = vmatpush1.bf16.msra.mxu0 0
        %782 = vmatprep.subr.bf16.mxu0 0
        %783 = vmatpush1.bf16.msra.mxu0 0
        %784 = vmatprep.subr.bf16.mxu0 0
        %785 = vmatpush1.bf16.msra.mxu0 0
        %786 = vmatprep.subr.bf16.mxu0 0
        %787 = vmatpush1.bf16.msra.mxu0 0
        %788 = vmatprep.subr.bf16.mxu0 0
        %789 = vmatpush1.bf16.msra.mxu0 0
        %790 = vmatprep.subr.bf16.mxu0 0
        %791 = vmatpush1.bf16.msra.mxu0 0
        %792 = vmatprep.subr.bf16.mxu0 0
        %793 = vmatpush1.bf16.msra.mxu0 0
        %794 = vmatprep.subr.bf16.mxu0 0
        %795 = vmatpush1.bf16.msra.mxu0 0
        %796 = vmatprep.subr.bf16.mxu0 0
        %797 = vmatpush1.bf16.msra.mxu0 0
        %798 = vmatprep.subr.bf16.mxu0 0
        %799 = vmatpush1.bf16.msra.mxu0 0
        %800 = vmatprep.subr.bf16.mxu0 0
        %801 = vmatpush1.bf16.msra.mxu0 0
        %802 = vmatprep.subr.bf16.mxu0 0
        %803 = vmatpush1.bf16.msra.mxu0 0
        %804 = vmatprep.subr.bf16.mxu0 0
        %805 = vmatpush1.bf16.msra.mxu0 0
        %806 = vmatprep.subr.bf16.mxu0 0
        %807 = vmatpush1.bf16.msra.mxu0 0
        %808 = vmatprep.mubr.bf16.mxu0 0
        %809 = vmatmul.mubr.bf16.gmra.mrb[0].mxu0 %v768
        %v810 = vpop.f32.mrb[0].mxu0
        %v811 = vadd.f32 0.0, %v810
        %v812 = vpop.f32.mrb[0].mxu0
        %v813 = vadd.f32 0.0, %v812
        %v814 = vpop.f32.mrb[0].mxu0
        %v815 = vpop.f32.mrb[0].mxu0
        %816 = vdwg.mxu0
        %s817 = scalar_lea.vmem %s1, 5
        %v818 = vld [vmem:[%s817] ss:$8 sm:$0x3]
        %v820 = vlaneseq
        %v821 = vshrl.u32 %v820, 7
        %v822 = vsub.s32 0, %v821
        %v823 = vrot.slane %v818, %v822
        %v824 = vlaneseq
        %v825 = vshrl.u32 %v824, 7
        %v826 = vsub.s32 1, %v825
        %v827 = vrot.slane %v818, %v826
        %v830 = vmul.f32 %v811, %v823
        %v831 = vmul.f32 %v813, %v827
        %v832 = vadd.f32 %v754, %v830
        %v833 = vadd.f32 %v755, %v831
        %834 = vrot.lane.b32.xlu0 %v308, 96
        %v835 = vpop.permute.xlu0 %834
        %836 = vrot.lane.b32.xlu0 %v309, 96
        %v837 = vpop.permute.xlu0 %836
        %vm838 = vcmp.lt.s32.totalorder %v315, 96
        %v839 = vsel %vm838, %v835, %v837
        %v840 = vsel %vm838, %v837, %v835
        %s841 = scalar_lea.vmem %s2, 28
        %v842 = vld [vmem:[%s841] sm:$0xf]
        %v843 = vpack.c.bf16 %v839, %v839
        %v844 = vpack.c.bf16 %v840, %v840
        %v846 = vsel %vm322, %v842, 0
        %v849 = vsel %vm326, %v843, 0
        %v852 = vsel %vm326, %v844, 0
        %854 = vmatprep.subr.bf16.mxu0 %v852
        %855 = vmatpush1.bf16.msra.mxu0 %v849
        %856 = vmatprep.subr.bf16.mxu0 0
        %857 = vmatpush1.bf16.msra.mxu0 0
        %858 = vmatprep.subr.bf16.mxu0 0
        %859 = vmatpush1.bf16.msra.mxu0 0
        %860 = vmatprep.subr.bf16.mxu0 0
        %861 = vmatpush1.bf16.msra.mxu0 0
        %862 = vmatprep.subr.bf16.mxu0 0
        %863 = vmatpush1.bf16.msra.mxu0 0
        %864 = vmatprep.subr.bf16.mxu0 0
        %865 = vmatpush1.bf16.msra.mxu0 0
        %866 = vmatprep.subr.bf16.mxu0 0
        %867 = vmatpush1.bf16.msra.mxu0 0
        %868 = vmatprep.subr.bf16.mxu0 0
        %869 = vmatpush1.bf16.msra.mxu0 0
        %870 = vmatprep.subr.bf16.mxu0 0
        %871 = vmatpush1.bf16.msra.mxu0 0
        %872 = vmatprep.subr.bf16.mxu0 0
        %873 = vmatpush1.bf16.msra.mxu0 0
        %874 = vmatprep.subr.bf16.mxu0 0
        %875 = vmatpush1.bf16.msra.mxu0 0
        %876 = vmatprep.subr.bf16.mxu0 0
        %877 = vmatpush1.bf16.msra.mxu0 0
        %878 = vmatprep.subr.bf16.mxu0 0
        %879 = vmatpush1.bf16.msra.mxu0 0
        %880 = vmatprep.subr.bf16.mxu0 0
        %881 = vmatpush1.bf16.msra.mxu0 0
        %882 = vmatprep.subr.bf16.mxu0 0
        %883 = vmatpush1.bf16.msra.mxu0 0
        %884 = vmatprep.subr.bf16.mxu0 0
        %885 = vmatpush1.bf16.msra.mxu0 0
        %886 = vmatprep.mubr.bf16.mxu0 0
        %887 = vmatmul.mubr.bf16.gmra.mrb[0].mxu0 %v846
        %v888 = vpop.f32.mrb[0].mxu0
        %v889 = vadd.f32 0.0, %v888
        %v890 = vpop.f32.mrb[0].mxu0
        %v891 = vadd.f32 0.0, %v890
        %v892 = vpop.f32.mrb[0].mxu0
        %v893 = vpop.f32.mrb[0].mxu0
        %894 = vdwg.mxu0
        %s895 = scalar_lea.vmem %s1, 6
        %v896 = vld [vmem:[%s895] ss:$8 sm:$0x3]
        %v898 = vlaneseq
        %v899 = vshrl.u32 %v898, 7
        %v900 = vsub.s32 0, %v899
        %v901 = vrot.slane %v896, %v900
        %v902 = vlaneseq
        %v903 = vshrl.u32 %v902, 7
        %v904 = vsub.s32 1, %v903
        %v905 = vrot.slane %v896, %v904
        %v908 = vmul.f32 %v889, %v901
        %v909 = vmul.f32 %v891, %v905
        %v910 = vadd.f32 %v832, %v908
        %v911 = vadd.f32 %v833, %v909
        %912 = vrot.lane.b32.xlu0 %v308, 94
        %v913 = vpop.permute.xlu0 %912
        %914 = vrot.lane.b32.xlu0 %v309, 94
        %v915 = vpop.permute.xlu0 %914
        %vm916 = vcmp.lt.s32.totalorder %v315, 94
        %v917 = vsel %vm916, %v913, %v915
        %v918 = vsel %vm916, %v915, %v913
        %s919 = scalar_lea.vmem %s2, 32
        %v920 = vld [vmem:[%s919] sm:$0xf]
        %v921 = vpack.c.bf16 %v917, %v917
        %v922 = vpack.c.bf16 %v918, %v918
        %v924 = vsel %vm322, %v920, 0
        %v927 = vsel %vm326, %v921, 0
        %v930 = vsel %vm326, %v922, 0
        %932 = vmatprep.subr.bf16.mxu0 %v930
        %933 = vmatpush1.bf16.msra.mxu0 %v927
        %934 = vmatprep.subr.bf16.mxu0 0
        %935 = vmatpush1.bf16.msra.mxu0 0
        %936 = vmatprep.subr.bf16.mxu0 0
        %937 = vmatpush1.bf16.msra.mxu0 0
        %938 = vmatprep.subr.bf16.mxu0 0
        %939 = vmatpush1.bf16.msra.mxu0 0
        %940 = vmatprep.subr.bf16.mxu0 0
        %941 = vmatpush1.bf16.msra.mxu0 0
        %942 = vmatprep.subr.bf16.mxu0 0
        %943 = vmatpush1.bf16.msra.mxu0 0
        %944 = vmatprep.subr.bf16.mxu0 0
        %945 = vmatpush1.bf16.msra.mxu0 0
        %946 = vmatprep.subr.bf16.mxu0 0
        %947 = vmatpush1.bf16.msra.mxu0 0
        %948 = vmatprep.subr.bf16.mxu0 0
        %949 = vmatpush1.bf16.msra.mxu0 0
        %950 = vmatprep.subr.bf16.mxu0 0
        %951 = vmatpush1.bf16.msra.mxu0 0
        %952 = vmatprep.subr.bf16.mxu0 0
        %953 = vmatpush1.bf16.msra.mxu0 0
        %954 = vmatprep.subr.bf16.mxu0 0
        %955 = vmatpush1.bf16.msra.mxu0 0
        %956 = vmatprep.subr.bf16.mxu0 0
        %957 = vmatpush1.bf16.msra.mxu0 0
        %958 = vmatprep.subr.bf16.mxu0 0
        %959 = vmatpush1.bf16.msra.mxu0 0
        %960 = vmatprep.subr.bf16.mxu0 0
        %961 = vmatpush1.bf16.msra.mxu0 0
        %962 = vmatprep.subr.bf16.mxu0 0
        %963 = vmatpush1.bf16.msra.mxu0 0
        %964 = vmatprep.mubr.bf16.mxu0 0
        %965 = vmatmul.mubr.bf16.gmra.mrb[0].mxu0 %v924
        %v966 = vpop.f32.mrb[0].mxu0
        %v967 = vadd.f32 0.0, %v966
        %v968 = vpop.f32.mrb[0].mxu0
        %v969 = vadd.f32 0.0, %v968
        %v970 = vpop.f32.mrb[0].mxu0
        %v971 = vpop.f32.mrb[0].mxu0
        %972 = vdwg.mxu0
        %s973 = scalar_lea.vmem %s1, 7
        %v974 = vld [vmem:[%s973] ss:$8 sm:$0x3]
        %v976 = vlaneseq
        %v977 = vshrl.u32 %v976, 7
        %v978 = vsub.s32 0, %v977
        %v979 = vrot.slane %v974, %v978
        %v980 = vlaneseq
        %v981 = vshrl.u32 %v980, 7
        %v982 = vsub.s32 1, %v981
        %v983 = vrot.slane %v974, %v982
        %v986 = vmul.f32 %v967, %v979
        %v987 = vmul.f32 %v969, %v983
        %v988 = vadd.f32 %v910, %v986
        %v989 = vadd.f32 %v911, %v987
        %v990 = vld [vmem:[%s5] sm:$0xff]
        %992 = vset.pattern.permute.xlu0 0
        %993 = vperm.xlu0 %992, %v990
        %v994 = vpop.permute.xlu0 %993
        %v996 = vadd.f32 %v988, %v994
        %v997 = vadd.f32 %v989, %v994
        %v998 = vmul.f32 %v996, 0.01
        %v999 = vmul.f32 %v997, 0.01
        %v1000 = vmax.f32 %v996, %v998
        %v1001 = vmax.f32 %v997, %v999
        %v1002 = vadd.f32 %v996, %v1000
        %v1003 = vadd.f32 %v997, %v1001
        %1004 = vrot.lane.b32.xlu0 %v1000, 68
        %v1005 = vpop.permute.xlu0 %1004
        %1006 = vrot.lane.b32.xlu0 %v1001, 68
        %v1007 = vpop.permute.xlu0 %1006
        %vm1008 = vcmp.lt.s32.totalorder %v315, 68
        %v1009 = vsel %vm1008, %v1005, %v1007
        %v1010 = vsel %vm1008, %v1007, %v1005
        %v1011 = vld [vmem:[%s3] sm:$0xf]
        %v1012 = vpack.c.bf16 %v1010, %v1010
        %v1013 = vpack.c.bf16 %v1009, %v1009
        %v1015 = vsel %vm322, %v1011, 0
        %v1018 = vsel %vm326, %v1012, 0
        %v1021 = vsel %vm326, %v1013, 0
        %1023 = vmatprep.subr.bf16.mxu0 %v1021
        %1024 = vmatpush1.bf16.msra.mxu0 %v1018
        %1025 = vmatprep.subr.bf16.mxu0 0
        %1026 = vmatpush1.bf16.msra.mxu0 0
        %1027 = vmatprep.subr.bf16.mxu0 0
        %1028 = vmatpush1.bf16.msra.mxu0 0
        %1029 = vmatprep.subr.bf16.mxu0 0
        %1030 = vmatpush1.bf16.msra.mxu0 0
        %1031 = vmatprep.subr.bf16.mxu0 0
        %1032 = vmatpush1.bf16.msra.mxu0 0
        %1033 = vmatprep.subr.bf16.mxu0 0
        %1034 = vmatpush1.bf16.msra.mxu0 0
        %1035 = vmatprep.subr.bf16.mxu0 0
        %1036 = vmatpush1.bf16.msra.mxu0 0
        %1037 = vmatprep.subr.bf16.mxu0 0
        %1038 = vmatpush1.bf16.msra.mxu0 0
        %1039 = vmatprep.subr.bf16.mxu0 0
        %1040 = vmatpush1.bf16.msra.mxu0 0
        %1041 = vmatprep.subr.bf16.mxu0 0
        %1042 = vmatpush1.bf16.msra.mxu0 0
        %1043 = vmatprep.subr.bf16.mxu0 0
        %1044 = vmatpush1.bf16.msra.mxu0 0
        %1045 = vmatprep.subr.bf16.mxu0 0
        %1046 = vmatpush1.bf16.msra.mxu0 0
        %1047 = vmatprep.subr.bf16.mxu0 0
        %1048 = vmatpush1.bf16.msra.mxu0 0
        %1049 = vmatprep.subr.bf16.mxu0 0
        %1050 = vmatpush1.bf16.msra.mxu0 0
        %1051 = vmatprep.subr.bf16.mxu0 0
        %1052 = vmatpush1.bf16.msra.mxu0 0
        %1053 = vmatprep.subr.bf16.mxu0 0
        %1054 = vmatpush1.bf16.msra.mxu0 0
        %1055 = vmatprep.mubr.bf16.mxu0 0
        %1056 = vmatmul.mubr.bf16.gmra.mrb[0].mxu0 %v1015
        %v1057 = vpop.f32.mrb[0].mxu0
        %v1058 = vadd.f32 0.0, %v1057
        %v1059 = vpop.f32.mrb[0].mxu0
        %v1060 = vadd.f32 0.0, %v1059
        %v1061 = vpop.f32.mrb[0].mxu0
        %v1062 = vpop.f32.mrb[0].mxu0
        %1063 = vdwg.mxu0
        %s1064 = scalar_lea.vmem %s1, 16
        %v1065 = vld [vmem:[%s1064] ss:$8 sm:$0x3]
        %v1067 = vlaneseq
        %v1068 = vshrl.u32 %v1067, 7
        %v1069 = vsub.s32 0, %v1068
        %v1070 = vrot.slane %v1065, %v1069
        %v1071 = vlaneseq
        %v1072 = vshrl.u32 %v1071, 7
        %v1073 = vsub.s32 1, %v1072
        %v1074 = vrot.slane %v1065, %v1073
        %v1077 = vmul.f32 %v1058, %v1070
        %v1078 = vmul.f32 %v1060, %v1074
        %1079 = vrot.lane.b32.xlu0 %v1000, 64
        %v1080 = vpop.permute.xlu0 %1079
        %1081 = vrot.lane.b32.xlu0 %v1001, 64
        %v1082 = vpop.permute.xlu0 %1081
        %vm1083 = vcmp.lt.s32.totalorder %v315, 64
        %v1084 = vsel %vm1083, %v1080, %v1082
        %v1085 = vsel %vm1083, %v1082, %v1080
        %s1086 = scalar_lea.vmem %s3, 4
        %v1087 = vld [vmem:[%s1086] sm:$0xf]
        %v1088 = vpack.c.bf16 %v1085, %v1085
        %v1089 = vpack.c.bf16 %v1084, %v1084
        %v1091 = vsel %vm322, %v1087, 0
        %v1094 = vsel %vm326, %v1088, 0
        %v1097 = vsel %vm326, %v1089, 0
        %1099 = vmatprep.subr.bf16.mxu0 %v1097
        %1100 = vmatpush1.bf16.msra.mxu0 %v1094
        %1101 = vmatprep.subr.bf16.mxu0 0
        %1102 = vmatpush1.bf16.msra.mxu0 0
        %1103 = vmatprep.subr.bf16.mxu0 0
        %1104 = vmatpush1.bf16.msra.mxu0 0
        %1105 = vmatprep.subr.bf16.mxu0 0
        %1106 = vmatpush1.bf16.msra.mxu0 0
        %1107 = vmatprep.subr.bf16.mxu0 0
        %1108 = vmatpush1.bf16.msra.mxu0 0
        %1109 = vmatprep.subr.bf16.mxu0 0
        %1110 = vmatpush1.bf16.msra.mxu0 0
        %1111 = vmatprep.subr.bf16.mxu0 0
        %1112 = vmatpush1.bf16.msra.mxu0 0
        %1113 = vmatprep.subr.bf16.mxu0 0
        %1114 = vmatpush1.bf16.msra.mxu0 0
        %1115 = vmatprep.subr.bf16.mxu0 0
        %1116 = vmatpush1.bf16.msra.mxu0 0
        %1117 = vmatprep.subr.bf16.mxu0 0
        %1118 = vmatpush1.bf16.msra.mxu0 0
        %1119 = vmatprep.subr.bf16.mxu0 0
        %1120 = vmatpush1.bf16.msra.mxu0 0
        %1121 = vmatprep.subr.bf16.mxu0 0
        %1122 = vmatpush1.bf16.msra.mxu0 0
        %1123 = vmatprep.subr.bf16.mxu0 0
        %1124 = vmatpush1.bf16.msra.mxu0 0
        %1125 = vmatprep.subr.bf16.mxu0 0
        %1126 = vmatpush1.bf16.msra.mxu0 0
        %1127 = vmatprep.subr.bf16.mxu0 0
        %1128 = vmatpush1.bf16.msra.mxu0 0
        %1129 = vmatprep.subr.bf16.mxu0 0
        %1130 = vmatpush1.bf16.msra.mxu0 0
        %1131 = vmatprep.mubr.bf16.mxu0 0
        %1132 = vmatmul.mubr.bf16.gmra.mrb[0].mxu0 %v1091
        %v1133 = vpop.f32.mrb[0].mxu0
        %v1134 = vadd.f32 0.0, %v1133
        %v1135 = vpop.f32.mrb[0].mxu0
        %v1136 = vadd.f32 0.0, %v1135
        %v1137 = vpop.f32.mrb[0].mxu0
        %v1138 = vpop.f32.mrb[0].mxu0
        %1139 = vdwg.mxu0
        %s1140 = scalar_lea.vmem %s1, 17
        %v1141 = vld [vmem:[%s1140] ss:$8 sm:$0x3]
        %v1143 = vlaneseq
        %v1144 = vshrl.u32 %v1143, 7
        %v1145 = vsub.s32 0, %v1144
        %v1146 = vrot.slane %v1141, %v1145
        %v1147 = vlaneseq
        %v1148 = vshrl.u32 %v1147, 7
        %v1149 = vsub.s32 1, %v1148
        %v1150 = vrot.slane %v1141, %v1149
        %v1153 = vmul.f32 %v1134, %v1146
        %v1154 = vmul.f32 %v1136, %v1150
        %v1155 = vadd.f32 %v1077, %v1153
        %v1156 = vadd.f32 %v1078, %v1154
        %1157 = vrot.lane.b32.xlu0 %v1000, 60
        %v1158 = vpop.permute.xlu0 %1157
        %1159 = vrot.lane.b32.xlu0 %v1001, 60
        %v1160 = vpop.permute.xlu0 %1159
        %vm1161 = vcmp.lt.s32.totalorder %v315, 60
        %v1162 = vsel %vm1161, %v1158, %v1160
        %v1163 = vsel %vm1161, %v1160, %v1158
        %s1164 = scalar_lea.vmem %s3, 8
        %v1165 = vld [vmem:[%s1164] sm:$0xf]
        %v1166 = vpack.c.bf16 %v1163, %v1163
        %v1167 = vpack.c.bf16 %v1162, %v1162
        %v1169 = vsel %vm322, %v1165, 0
        %v1172 = vsel %vm326, %v1166, 0
        %v1175 = vsel %vm326, %v1167, 0
        %1177 = vmatprep.subr.bf16.mxu0 %v1175
        %1178 = vmatpush1.bf16.msra.mxu0 %v1172
        %1179 = vmatprep.subr.bf16.mxu0 0
        %1180 = vmatpush1.bf16.msra.mxu0 0
        %1181 = vmatprep.subr.bf16.mxu0 0
        %1182 = vmatpush1.bf16.msra.mxu0 0
        %1183 = vmatprep.subr.bf16.mxu0 0
        %1184 = vmatpush1.bf16.msra.mxu0 0
        %1185 = vmatprep.subr.bf16.mxu0 0
        %1186 = vmatpush1.bf16.msra.mxu0 0
        %1187 = vmatprep.subr.bf16.mxu0 0
        %1188 = vmatpush1.bf16.msra.mxu0 0
        %1189 = vmatprep.subr.bf16.mxu0 0
        %1190 = vmatpush1.bf16.msra.mxu0 0
        %1191 = vmatprep.subr.bf16.mxu0 0
        %1192 = vmatpush1.bf16.msra.mxu0 0
        %1193 = vmatprep.subr.bf16.mxu0 0
        %1194 = vmatpush1.bf16.msra.mxu0 0
        %1195 = vmatprep.subr.bf16.mxu0 0
        %1196 = vmatpush1.bf16.msra.mxu0 0
        %1197 = vmatprep.subr.bf16.mxu0 0
        %1198 = vmatpush1.bf16.msra.mxu0 0
        %1199 = vmatprep.subr.bf16.mxu0 0
        %1200 = vmatpush1.bf16.msra.mxu0 0
        %1201 = vmatprep.subr.bf16.mxu0 0
        %1202 = vmatpush1.bf16.msra.mxu0 0
        %1203 = vmatprep.subr.bf16.mxu0 0
        %1204 = vmatpush1.bf16.msra.mxu0 0
        %1205 = vmatprep.subr.bf16.mxu0 0
        %1206 = vmatpush1.bf16.msra.mxu0 0
        %1207 = vmatprep.subr.bf16.mxu0 0
        %1208 = vmatpush1.bf16.msra.mxu0 0
        %1209 = vmatprep.mubr.bf16.mxu0 0
        %1210 = vmatmul.mubr.bf16.gmra.mrb[0].mxu0 %v1169
        %v1211 = vpop.f32.mrb[0].mxu0
        %v1212 = vadd.f32 0.0, %v1211
        %v1213 = vpop.f32.mrb[0].mxu0
        %v1214 = vadd.f32 0.0, %v1213
        %v1215 = vpop.f32.mrb[0].mxu0
        %v1216 = vpop.f32.mrb[0].mxu0
        %1217 = vdwg.mxu0
        %s1218 = scalar_lea.vmem %s1, 18
        %v1219 = vld [vmem:[%s1218] ss:$8 sm:$0x3]
        %v1221 = vlaneseq
        %v1222 = vshrl.u32 %v1221, 7
        %v1223 = vsub.s32 0, %v1222
        %v1224 = vrot.slane %v1219, %v1223
        %v1225 = vlaneseq
        %v1226 = vshrl.u32 %v1225, 7
        %v1227 = vsub.s32 1, %v1226
        %v1228 = vrot.slane %v1219, %v1227
        %v1231 = vmul.f32 %v1212, %v1224
        %v1232 = vmul.f32 %v1214, %v1228
        %v1233 = vadd.f32 %v1155, %v1231
        %v1234 = vadd.f32 %v1156, %v1232
        %1235 = vrot.lane.b32.xlu0 %v1000, 4
        %v1236 = vpop.permute.xlu0 %1235
        %1237 = vrot.lane.b32.xlu0 %v1001, 4
        %v1238 = vpop.permute.xlu0 %1237
        %vm1239 = vcmp.lt.s32.totalorder %v315, 4
        %v1240 = vsel %vm1239, %v1236, %v1238
        %v1241 = vsel %vm1239, %v1238, %v1236
        %s1242 = scalar_lea.vmem %s3, 12
        %v1243 = vld [vmem:[%s1242] sm:$0xf]
        %v1244 = vpack.c.bf16 %v1241, %v1241
        %v1245 = vpack.c.bf16 %v1240, %v1240
        %v1247 = vsel %vm322, %v1243, 0
        %v1250 = vsel %vm326, %v1244, 0
        %v1253 = vsel %vm326, %v1245, 0
        %1255 = vmatprep.subr.bf16.mxu0 %v1253
        %1256 = vmatpush1.bf16.msra.mxu0 %v1250
        %1257 = vmatprep.subr.bf16.mxu0 0
        %1258 = vmatpush1.bf16.msra.mxu0 0
        %1259 = vmatprep.subr.bf16.mxu0 0
        %1260 = vmatpush1.bf16.msra.mxu0 0
        %1261 = vmatprep.subr.bf16.mxu0 0
        %1262 = vmatpush1.bf16.msra.mxu0 0
        %1263 = vmatprep.subr.bf16.mxu0 0
        %1264 = vmatpush1.bf16.msra.mxu0 0
        %1265 = vmatprep.subr.bf16.mxu0 0
        %1266 = vmatpush1.bf16.msra.mxu0 0
        %1267 = vmatprep.subr.bf16.mxu0 0
        %1268 = vmatpush1.bf16.msra.mxu0 0
        %1269 = vmatprep.subr.bf16.mxu0 0
        %1270 = vmatpush1.bf16.msra.mxu0 0
        %1271 = vmatprep.subr.bf16.mxu0 0
        %1272 = vmatpush1.bf16.msra.mxu0 0
        %1273 = vmatprep.subr.bf16.mxu0 0
        %1274 = vmatpush1.bf16.msra.mxu0 0
        %1275 = vmatprep.subr.bf16.mxu0 0
        %1276 = vmatpush1.bf16.msra.mxu0 0
        %1277 = vmatprep.subr.bf16.mxu0 0
        %1278 = vmatpush1.bf16.msra.mxu0 0
        %1279 = vmatprep.subr.bf16.mxu0 0
        %1280 = vmatpush1.bf16.msra.mxu0 0
        %1281 = vmatprep.subr.bf16.mxu0 0
        %1282 = vmatpush1.bf16.msra.mxu0 0
        %1283 = vmatprep.subr.bf16.mxu0 0
        %1284 = vmatpush1.bf16.msra.mxu0 0
        %1285 = vmatprep.subr.bf16.mxu0 0
        %1286 = vmatpush1.bf16.msra.mxu0 0
        %1287 = vmatprep.mubr.bf16.mxu0 0
        %1288 = vmatmul.mubr.bf16.gmra.mrb[0].mxu0 %v1247
        %v1289 = vpop.f32.mrb[0].mxu0
        %v1290 = vadd.f32 0.0, %v1289
        %v1291 = vpop.f32.mrb[0].mxu0
        %v1292 = vadd.f32 0.0, %v1291
        %v1293 = vpop.f32.mrb[0].mxu0
        %v1294 = vpop.f32.mrb[0].mxu0
        %1295 = vdwg.mxu0
        %s1296 = scalar_lea.vmem %s1, 19
        %v1297 = vld [vmem:[%s1296] ss:$8 sm:$0x3]
        %v1299 = vlaneseq
        %v1300 = vshrl.u32 %v1299, 7
        %v1301 = vsub.s32 0, %v1300
        %v1302 = vrot.slane %v1297, %v1301
        %v1303 = vlaneseq
        %v1304 = vshrl.u32 %v1303, 7
        %v1305 = vsub.s32 1, %v1304
        %v1306 = vrot.slane %v1297, %v1305
        %v1309 = vmul.f32 %v1290, %v1302
        %v1310 = vmul.f32 %v1292, %v1306
        %v1311 = vadd.f32 %v1233, %v1309
        %v1312 = vadd.f32 %v1234, %v1310
        %s1313 = scalar_lea.vmem %s3, 16
        %v1314 = vld [vmem:[%s1313] sm:$0xf]
        %v1315 = vpack.c.bf16 %v1000, %v1000
        %v1316 = vpack.c.bf16 %v1001, %v1001
        %v1318 = vsel %vm322, %v1314, 0
        %v1321 = vsel %vm326, %v1315, 0
        %v1324 = vsel %vm326, %v1316, 0
        %1326 = vmatprep.subr.bf16.mxu0 %v1324
        %1327 = vmatpush1.bf16.msra.mxu0 %v1321
        %1328 = vmatprep.subr.bf16.mxu0 0
        %1329 = vmatpush1.bf16.msra.mxu0 0
        %1330 = vmatprep.subr.bf16.mxu0 0
        %1331 = vmatpush1.bf16.msra.mxu0 0
        %1332 = vmatprep.subr.bf16.mxu0 0
        %1333 = vmatpush1.bf16.msra.mxu0 0
        %1334 = vmatprep.subr.bf16.mxu0 0
        %1335 = vmatpush1.bf16.msra.mxu0 0
        %1336 = vmatprep.subr.bf16.mxu0 0
        %1337 = vmatpush1.bf16.msra.mxu0 0
        %1338 = vmatprep.subr.bf16.mxu0 0
        %1339 = vmatpush1.bf16.msra.mxu0 0
        %1340 = vmatprep.subr.bf16.mxu0 0
        %1341 = vmatpush1.bf16.msra.mxu0 0
        %1342 = vmatprep.subr.bf16.mxu0 0
        %1343 = vmatpush1.bf16.msra.mxu0 0
        %1344 = vmatprep.subr.bf16.mxu0 0
        %1345 = vmatpush1.bf16.msra.mxu0 0
        %1346 = vmatprep.subr.bf16.mxu0 0
        %1347 = vmatpush1.bf16.msra.mxu0 0
        %1348 = vmatprep.subr.bf16.mxu0 0
        %1349 = vmatpush1.bf16.msra.mxu0 0
        %1350 = vmatprep.subr.bf16.mxu0 0
        %1351 = vmatpush1.bf16.msra.mxu0 0
        %1352 = vmatprep.subr.bf16.mxu0 0
        %1353 = vmatpush1.bf16.msra.mxu0 0
        %1354 = vmatprep.subr.bf16.mxu0 0
        %1355 = vmatpush1.bf16.msra.mxu0 0
        %1356 = vmatprep.subr.bf16.mxu0 0
        %1357 = vmatpush1.bf16.msra.mxu0 0
        %1358 = vmatprep.mubr.bf16.mxu0 0
        %1359 = vmatmul.mubr.bf16.gmra.mrb[0].mxu0 %v1318
        %v1360 = vpop.f32.mrb[0].mxu0
        %v1361 = vadd.f32 0.0, %v1360
        %v1362 = vpop.f32.mrb[0].mxu0
        %v1363 = vadd.f32 0.0, %v1362
        %v1364 = vpop.f32.mrb[0].mxu0
        %v1365 = vpop.f32.mrb[0].mxu0
        %1366 = vdwg.mxu0
        %v1367 = vadd.f32 %v1311, %v1361
        %v1368 = vadd.f32 %v1312, %v1363
        %1369 = vrot.lane.b32.xlu0 %v1000, 124
        %v1370 = vpop.permute.xlu0 %1369
        %1371 = vrot.lane.b32.xlu0 %v1001, 124
        %v1372 = vpop.permute.xlu0 %1371
        %vm1373 = vcmp.lt.s32.totalorder %v315, 124
        %v1374 = vsel %vm1373, %v1370, %v1372
        %v1375 = vsel %vm1373, %v1372, %v1370
        %s1376 = scalar_lea.vmem %s3, 20
        %v1377 = vld [vmem:[%s1376] sm:$0xf]
        %v1378 = vpack.c.bf16 %v1374, %v1374
        %v1379 = vpack.c.bf16 %v1375, %v1375
        %v1381 = vsel %vm322, %v1377, 0
        %v1384 = vsel %vm326, %v1378, 0
        %v1387 = vsel %vm326, %v1379, 0
        %1389 = vmatprep.subr.bf16.mxu0 %v1387
        %1390 = vmatpush1.bf16.msra.mxu0 %v1384
        %1391 = vmatprep.subr.bf16.mxu0 0
        %1392 = vmatpush1.bf16.msra.mxu0 0
        %1393 = vmatprep.subr.bf16.mxu0 0
        %1394 = vmatpush1.bf16.msra.mxu0 0
        %1395 = vmatprep.subr.bf16.mxu0 0
        %1396 = vmatpush1.bf16.msra.mxu0 0
        %1397 = vmatprep.subr.bf16.mxu0 0
        %1398 = vmatpush1.bf16.msra.mxu0 0
        %1399 = vmatprep.subr.bf16.mxu0 0
        %1400 = vmatpush1.bf16.msra.mxu0 0
        %1401 = vmatprep.subr.bf16.mxu0 0
        %1402 = vmatpush1.bf16.msra.mxu0 0
        %1403 = vmatprep.subr.bf16.mxu0 0
        %1404 = vmatpush1.bf16.msra.mxu0 0
        %1405 = vmatprep.subr.bf16.mxu0 0
        %1406 = vmatpush1.bf16.msra.mxu0 0
        %1407 = vmatprep.subr.bf16.mxu0 0
        %1408 = vmatpush1.bf16.msra.mxu0 0
        %1409 = vmatprep.subr.bf16.mxu0 0
        %1410 = vmatpush1.bf16.msra.mxu0 0
        %1411 = vmatprep.subr.bf16.mxu0 0
        %1412 = vmatpush1.bf16.msra.mxu0 0
        %1413 = vmatprep.subr.bf16.mxu0 0
        %1414 = vmatpush1.bf16.msra.mxu0 0
        %1415 = vmatprep.subr.bf16.mxu0 0
        %1416 = vmatpush1.bf16.msra.mxu0 0
        %1417 = vmatprep.subr.bf16.mxu0 0
        %1418 = vmatpush1.bf16.msra.mxu0 0
        %1419 = vmatprep.subr.bf16.mxu0 0
        %1420 = vmatpush1.bf16.msra.mxu0 0
        %1421 = vmatprep.mubr.bf16.mxu0 0
        %1422 = vmatmul.mubr.bf16.gmra.mrb[0].mxu0 %v1381
        %v1423 = vpop.f32.mrb[0].mxu0
        %v1424 = vadd.f32 0.0, %v1423
        %v1425 = vpop.f32.mrb[0].mxu0
        %v1426 = vadd.f32 0.0, %v1425
        %v1427 = vpop.f32.mrb[0].mxu0
        %v1428 = vpop.f32.mrb[0].mxu0
        %1429 = vdwg.mxu0
        %s1430 = scalar_lea.vmem %s1, 20
        %v1431 = vld [vmem:[%s1430] ss:$8 sm:$0x3]
        %v1433 = vlaneseq
        %v1434 = vshrl.u32 %v1433, 7
        %v1435 = vsub.s32 0, %v1434
        %v1436 = vrot.slane %v1431, %v1435
        %v1437 = vlaneseq
        %v1438 = vshrl.u32 %v1437, 7
        %v1439 = vsub.s32 1, %v1438
        %v1440 = vrot.slane %v1431, %v1439
        %v1443 = vmul.f32 %v1424, %v1436
        %v1444 = vmul.f32 %v1426, %v1440
        %v1445 = vadd.f32 %v1367, %v1443
        %v1446 = vadd.f32 %v1368, %v1444
        %s1447 = scalar_lea.vmem %s3, 24
        %v1448 = vld [vmem:[%s1447] sm:$0xf]
        %v1450 = vsel %vm322, %v1448, 0
        %1452 = vmatprep.subr.bf16.mxu0 %v1018
        %1453 = vmatpush1.bf16.msra.mxu0 %v1021
        %1454 = vmatprep.subr.bf16.mxu0 0
        %1455 = vmatpush1.bf16.msra.mxu0 0
        %1456 = vmatprep.subr.bf16.mxu0 0
        %1457 = vmatpush1.bf16.msra.mxu0 0
        %1458 = vmatprep.subr.bf16.mxu0 0
        %1459 = vmatpush1.bf16.msra.mxu0 0
        %1460 = vmatprep.subr.bf16.mxu0 0
        %1461 = vmatpush1.bf16.msra.mxu0 0
        %1462 = vmatprep.subr.bf16.mxu0 0
        %1463 = vmatpush1.bf16.msra.mxu0 0
        %1464 = vmatprep.subr.bf16.mxu0 0
        %1465 = vmatpush1.bf16.msra.mxu0 0
        %1466 = vmatprep.subr.bf16.mxu0 0
        %1467 = vmatpush1.bf16.msra.mxu0 0
        %1468 = vmatprep.subr.bf16.mxu0 0
        %1469 = vmatpush1.bf16.msra.mxu0 0
        %1470 = vmatprep.subr.bf16.mxu0 0
        %1471 = vmatpush1.bf16.msra.mxu0 0
        %1472 = vmatprep.subr.bf16.mxu0 0
        %1473 = vmatpush1.bf16.msra.mxu0 0
        %1474 = vmatprep.subr.bf16.mxu0 0
        %1475 = vmatpush1.bf16.msra.mxu0 0
        %1476 = vmatprep.subr.bf16.mxu0 0
        %1477 = vmatpush1.bf16.msra.mxu0 0
        %1478 = vmatprep.subr.bf16.mxu0 0
        %1479 = vmatpush1.bf16.msra.mxu0 0
        %1480 = vmatprep.subr.bf16.mxu0 0
        %1481 = vmatpush1.bf16.msra.mxu0 0
        %1482 = vmatprep.subr.bf16.mxu0 0
        %1483 = vmatpush1.bf16.msra.mxu0 0
        %1484 = vmatprep.mubr.bf16.mxu0 0
        %1485 = vmatmul.mubr.bf16.gmra.mrb[0].mxu0 %v1450
        %v1486 = vpop.f32.mrb[0].mxu0
        %v1487 = vadd.f32 0.0, %v1486
        %v1488 = vpop.f32.mrb[0].mxu0
        %v1489 = vadd.f32 0.0, %v1488
        %v1490 = vpop.f32.mrb[0].mxu0
        %v1491 = vpop.f32.mrb[0].mxu0
        %1492 = vdwg.mxu0
        %s1493 = scalar_lea.vmem %s1, 21
        %v1494 = vld [vmem:[%s1493] ss:$8 sm:$0x3]
        %v1496 = vlaneseq
        %v1497 = vshrl.u32 %v1496, 7
        %v1498 = vsub.s32 0, %v1497
        %v1499 = vrot.slane %v1494, %v1498
        %v1500 = vlaneseq
        %v1501 = vshrl.u32 %v1500, 7
        %v1502 = vsub.s32 1, %v1501
        %v1503 = vrot.slane %v1494, %v1502
        %v1506 = vmul.f32 %v1487, %v1499
        %v1507 = vmul.f32 %v1489, %v1503
        %v1508 = vadd.f32 %v1445, %v1506
        %v1509 = vadd.f32 %v1446, %v1507
        %s1510 = scalar_lea.vmem %s3, 28
        %v1511 = vld [vmem:[%s1510] sm:$0xf]
        %v1513 = vsel %vm322, %v1511, 0
        %1515 = vmatprep.subr.bf16.mxu0 %v1094
        %1516 = vmatpush1.bf16.msra.mxu0 %v1097
        %1517 = vmatprep.subr.bf16.mxu0 0
        %1518 = vmatpush1.bf16.msra.mxu0 0
        %1519 = vmatprep.subr.bf16.mxu0 0
        %1520 = vmatpush1.bf16.msra.mxu0 0
        %1521 = vmatprep.subr.bf16.mxu0 0
        %1522 = vmatpush1.bf16.msra.mxu0 0
        %1523 = vmatprep.subr.bf16.mxu0 0
        %1524 = vmatpush1.bf16.msra.mxu0 0
        %1525 = vmatprep.subr.bf16.mxu0 0
        %1526 = vmatpush1.bf16.msra.mxu0 0
        %1527 = vmatprep.subr.bf16.mxu0 0
        %1528 = vmatpush1.bf16.msra.mxu0 0
        %1529 = vmatprep.subr.bf16.mxu0 0
        %1530 = vmatpush1.bf16.msra.mxu0 0
        %1531 = vmatprep.subr.bf16.mxu0 0
        %1532 = vmatpush1.bf16.msra.mxu0 0
        %1533 = vmatprep.subr.bf16.mxu0 0
        %1534 = vmatpush1.bf16.msra.mxu0 0
        %1535 = vmatprep.subr.bf16.mxu0 0
        %1536 = vmatpush1.bf16.msra.mxu0 0
        %1537 = vmatprep.subr.bf16.mxu0 0
        %1538 = vmatpush1.bf16.msra.mxu0 0
        %1539 = vmatprep.subr.bf16.mxu0 0
        %1540 = vmatpush1.bf16.msra.mxu0 0
        %1541 = vmatprep.subr.bf16.mxu0 0
        %1542 = vmatpush1.bf16.msra.mxu0 0
        %1543 = vmatprep.subr.bf16.mxu0 0
        %1544 = vmatpush1.bf16.msra.mxu0 0
        %1545 = vmatprep.subr.bf16.mxu0 0
        %1546 = vmatpush1.bf16.msra.mxu0 0
        %1547 = vmatprep.mubr.bf16.mxu0 0
        %1548 = vmatmul.mubr.bf16.gmra.mrb[0].mxu0 %v1513
        %v1549 = vpop.f32.mrb[0].mxu0
        %v1550 = vadd.f32 0.0, %v1549
        %v1551 = vpop.f32.mrb[0].mxu0
        %v1552 = vadd.f32 0.0, %v1551
        %v1553 = vpop.f32.mrb[0].mxu0
        %v1554 = vpop.f32.mrb[0].mxu0
        %1555 = vdwg.mxu0
        %s1556 = scalar_lea.vmem %s1, 22
        %v1557 = vld [vmem:[%s1556] ss:$8 sm:$0x3]
        %v1559 = vlaneseq
        %v1560 = vshrl.u32 %v1559, 7
        %v1561 = vsub.s32 0, %v1560
        %v1562 = vrot.slane %v1557, %v1561
        %v1563 = vlaneseq
        %v1564 = vshrl.u32 %v1563, 7
        %v1565 = vsub.s32 1, %v1564
        %v1566 = vrot.slane %v1557, %v1565
        %v1569 = vmul.f32 %v1550, %v1562
        %v1570 = vmul.f32 %v1552, %v1566
        %v1571 = vadd.f32 %v1508, %v1569
        %v1572 = vadd.f32 %v1509, %v1570
        %s1573 = scalar_lea.vmem %s3, 32
        %v1574 = vld [vmem:[%s1573] sm:$0xf]
        %v1576 = vsel %vm322, %v1574, 0
        %1578 = vmatprep.subr.bf16.mxu0 %v1172
        %1579 = vmatpush1.bf16.msra.mxu0 %v1175
        %1580 = vmatprep.subr.bf16.mxu0 0
        %1581 = vmatpush1.bf16.msra.mxu0 0
        %1582 = vmatprep.subr.bf16.mxu0 0
        %1583 = vmatpush1.bf16.msra.mxu0 0
        %1584 = vmatprep.subr.bf16.mxu0 0
        %1585 = vmatpush1.bf16.msra.mxu0 0
        %1586 = vmatprep.subr.bf16.mxu0 0
        %1587 = vmatpush1.bf16.msra.mxu0 0
        %1588 = vmatprep.subr.bf16.mxu0 0
        %1589 = vmatpush1.bf16.msra.mxu0 0
        %1590 = vmatprep.subr.bf16.mxu0 0
        %1591 = vmatpush1.bf16.msra.mxu0 0
        %1592 = vmatprep.subr.bf16.mxu0 0
        %1593 = vmatpush1.bf16.msra.mxu0 0
        %1594 = vmatprep.subr.bf16.mxu0 0
        %1595 = vmatpush1.bf16.msra.mxu0 0
        %1596 = vmatprep.subr.bf16.mxu0 0
        %1597 = vmatpush1.bf16.msra.mxu0 0
        %1598 = vmatprep.subr.bf16.mxu0 0
        %1599 = vmatpush1.bf16.msra.mxu0 0
        %1600 = vmatprep.subr.bf16.mxu0 0
        %1601 = vmatpush1.bf16.msra.mxu0 0
        %1602 = vmatprep.subr.bf16.mxu0 0
        %1603 = vmatpush1.bf16.msra.mxu0 0
        %1604 = vmatprep.subr.bf16.mxu0 0
        %1605 = vmatpush1.bf16.msra.mxu0 0
        %1606 = vmatprep.subr.bf16.mxu0 0
        %1607 = vmatpush1.bf16.msra.mxu0 0
        %1608 = vmatprep.subr.bf16.mxu0 0
        %1609 = vmatpush1.bf16.msra.mxu0 0
        %1610 = vmatprep.mubr.bf16.mxu0 0
        %1611 = vmatmul.mubr.bf16.gmra.mrb[0].mxu0 %v1576
        %v1612 = vpop.f32.mrb[0].mxu0
        %v1613 = vadd.f32 0.0, %v1612
        %v1614 = vpop.f32.mrb[0].mxu0
        %v1615 = vadd.f32 0.0, %v1614
        %v1616 = vpop.f32.mrb[0].mxu0
        %v1617 = vpop.f32.mrb[0].mxu0
        %1618 = vdwg.mxu0
        %s1619 = scalar_lea.vmem %s1, 23
        %v1620 = vld [vmem:[%s1619] ss:$8 sm:$0x3]
        %v1622 = vlaneseq
        %v1623 = vshrl.u32 %v1622, 7
        %v1624 = vsub.s32 0, %v1623
        %v1625 = vrot.slane %v1620, %v1624
        %v1626 = vlaneseq
        %v1627 = vshrl.u32 %v1626, 7
        %v1628 = vsub.s32 1, %v1627
        %v1629 = vrot.slane %v1620, %v1628
        %v1632 = vmul.f32 %v1613, %v1625
        %v1633 = vmul.f32 %v1615, %v1629
        %v1634 = vadd.f32 %v1571, %v1632
        %v1635 = vadd.f32 %v1572, %v1633
        %v1636 = vld [vmem:[%s6] sm:$0xff]
        %1638 = vset.pattern.permute.xlu0 0
        %1639 = vperm.xlu0 %1638, %v1636
        %v1640 = vpop.permute.xlu0 %1639
        %v1642 = vadd.f32 %v1634, %v1640
        %v1643 = vadd.f32 %v1635, %v1640
        %v1644 = vmul.f32 %v1642, 0.01
        %v1645 = vmul.f32 %v1643, 0.01
        %v1646 = vmax.f32 %v1642, %v1644
        %v1647 = vmax.f32 %v1643, %v1645
        %v1648 = vadd.f32 %v1642, %v1646
        %v1649 = vadd.f32 %v1643, %v1647
        %v1650 = vadd.f32 %v1002, %v1648
        %v1651 = vadd.f32 %v1003, %v1649
        %1652 = vrot.lane.b32.xlu0 %v1646, 102
        %v1653 = vpop.permute.xlu0 %1652
        %1654 = vrot.lane.b32.xlu0 %v1647, 102
        %v1655 = vpop.permute.xlu0 %1654
        %vm1656 = vcmp.lt.s32.totalorder %v315, 102
        %v1657 = vsel %vm1656, %v1653, %v1655
        %v1658 = vsel %vm1656, %v1655, %v1653
        %v1659 = vld [vmem:[%s4] sm:$0xf]
        %v1660 = vpack.c.bf16 %v1658, %v1658
        %v1661 = vpack.c.bf16 %v1657, %v1657
        %v1663 = vsel %vm322, %v1659, 0
        %v1666 = vsel %vm326, %v1660, 0
        %v1669 = vsel %vm326, %v1661, 0
        %1671 = vmatprep.subr.bf16.mxu0 %v1669
        %1672 = vmatpush1.bf16.msra.mxu0 %v1666
        %1673 = vmatprep.subr.bf16.mxu0 0
        %1674 = vmatpush1.bf16.msra.mxu0 0
        %1675 = vmatprep.subr.bf16.mxu0 0
        %1676 = vmatpush1.bf16.msra.mxu0 0
        %1677 = vmatprep.subr.bf16.mxu0 0
        %1678 = vmatpush1.bf16.msra.mxu0 0
        %1679 = vmatprep.subr.bf16.mxu0 0
        %1680 = vmatpush1.bf16.msra.mxu0 0
        %1681 = vmatprep.subr.bf16.mxu0 0
        %1682 = vmatpush1.bf16.msra.mxu0 0
        %1683 = vmatprep.subr.bf16.mxu0 0
        %1684 = vmatpush1.bf16.msra.mxu0 0
        %1685 = vmatprep.subr.bf16.mxu0 0
        %1686 = vmatpush1.bf16.msra.mxu0 0
        %1687 = vmatprep.subr.bf16.mxu0 0
        %1688 = vmatpush1.bf16.msra.mxu0 0
        %1689 = vmatprep.subr.bf16.mxu0 0
        %1690 = vmatpush1.bf16.msra.mxu0 0
        %1691 = vmatprep.subr.bf16.mxu0 0
        %1692 = vmatpush1.bf16.msra.mxu0 0
        %1693 = vmatprep.subr.bf16.mxu0 0
        %1694 = vmatpush1.bf16.msra.mxu0 0
        %1695 = vmatprep.subr.bf16.mxu0 0
        %1696 = vmatpush1.bf16.msra.mxu0 0
        %1697 = vmatprep.subr.bf16.mxu0 0
        %1698 = vmatpush1.bf16.msra.mxu0 0
        %1699 = vmatprep.subr.bf16.mxu0 0
        %1700 = vmatpush1.bf16.msra.mxu0 0
        %1701 = vmatprep.subr.bf16.mxu0 0
        %1702 = vmatpush1.bf16.msra.mxu0 0
        %1703 = vmatprep.mubr.bf16.mxu0 0
        %1704 = vmatmul.mubr.bf16.gmra.mrb[0].mxu0 %v1663
        %v1705 = vpop.f32.mrb[0].mxu0
        %v1706 = vadd.f32 0.0, %v1705
        %v1707 = vpop.f32.mrb[0].mxu0
        %v1708 = vadd.f32 0.0, %v1707
        %v1709 = vpop.f32.mrb[0].mxu0
        %v1710 = vpop.f32.mrb[0].mxu0
        %1711 = vdwg.mxu0
        %s1712 = scalar_lea.vmem %s1, 32
        %v1713 = vld [vmem:[%s1712] ss:$8 sm:$0x3]
        %v1715 = vlaneseq
        %v1716 = vshrl.u32 %v1715, 7
        %v1717 = vsub.s32 0, %v1716
        %v1718 = vrot.slane %v1713, %v1717
        %v1719 = vlaneseq
        %v1720 = vshrl.u32 %v1719, 7
        %v1721 = vsub.s32 1, %v1720
        %v1722 = vrot.slane %v1713, %v1721
        %v1725 = vmul.f32 %v1706, %v1718
        %v1726 = vmul.f32 %v1708, %v1722
        %1727 = vrot.lane.b32.xlu0 %v1646, 96
        %v1728 = vpop.permute.xlu0 %1727
        %1729 = vrot.lane.b32.xlu0 %v1647, 96
        %v1730 = vpop.permute.xlu0 %1729
        %v1731 = vsel %vm838, %v1728, %v1730
        %v1732 = vsel %vm838, %v1730, %v1728
        %s1733 = scalar_lea.vmem %s4, 4
        %v1734 = vld [vmem:[%s1733] sm:$0xf]
        %v1735 = vpack.c.bf16 %v1732, %v1732
        %v1736 = vpack.c.bf16 %v1731, %v1731
        %v1738 = vsel %vm322, %v1734, 0
        %v1741 = vsel %vm326, %v1735, 0
        %v1744 = vsel %vm326, %v1736, 0
        %1746 = vmatprep.subr.bf16.mxu0 %v1744
        %1747 = vmatpush1.bf16.msra.mxu0 %v1741
        %1748 = vmatprep.subr.bf16.mxu0 0
        %1749 = vmatpush1.bf16.msra.mxu0 0
        %1750 = vmatprep.subr.bf16.mxu0 0
        %1751 = vmatpush1.bf16.msra.mxu0 0
        %1752 = vmatprep.subr.bf16.mxu0 0
        %1753 = vmatpush1.bf16.msra.mxu0 0
        %1754 = vmatprep.subr.bf16.mxu0 0
        %1755 = vmatpush1.bf16.msra.mxu0 0
        %1756 = vmatprep.subr.bf16.mxu0 0
        %1757 = vmatpush1.bf16.msra.mxu0 0
        %1758 = vmatprep.subr.bf16.mxu0 0
        %1759 = vmatpush1.bf16.msra.mxu0 0
        %1760 = vmatprep.subr.bf16.mxu0 0
        %1761 = vmatpush1.bf16.msra.mxu0 0
        %1762 = vmatprep.subr.bf16.mxu0 0
        %1763 = vmatpush1.bf16.msra.mxu0 0
        %1764 = vmatprep.subr.bf16.mxu0 0
        %1765 = vmatpush1.bf16.msra.mxu0 0
        %1766 = vmatprep.subr.bf16.mxu0 0
        %1767 = vmatpush1.bf16.msra.mxu0 0
        %1768 = vmatprep.subr.bf16.mxu0 0
        %1769 = vmatpush1.bf16.msra.mxu0 0
        %1770 = vmatprep.subr.bf16.mxu0 0
        %1771 = vmatpush1.bf16.msra.mxu0 0
        %1772 = vmatprep.subr.bf16.mxu0 0
        %1773 = vmatpush1.bf16.msra.mxu0 0
        %1774 = vmatprep.subr.bf16.mxu0 0
        %1775 = vmatpush1.bf16.msra.mxu0 0
        %1776 = vmatprep.subr.bf16.mxu0 0
        %1777 = vmatpush1.bf16.msra.mxu0 0
        %1778 = vmatprep.mubr.bf16.mxu0 0
        %1779 = vmatmul.mubr.bf16.gmra.mrb[0].mxu0 %v1738
        %v1780 = vpop.f32.mrb[0].mxu0
        %v1781 = vadd.f32 0.0, %v1780
        %v1782 = vpop.f32.mrb[0].mxu0
        %v1783 = vadd.f32 0.0, %v1782
        %v1784 = vpop.f32.mrb[0].mxu0
        %v1785 = vpop.f32.mrb[0].mxu0
        %1786 = vdwg.mxu0
        %s1787 = scalar_lea.vmem %s1, 33
        %v1788 = vld [vmem:[%s1787] ss:$8 sm:$0x3]
        %v1790 = vlaneseq
        %v1791 = vshrl.u32 %v1790, 7
        %v1792 = vsub.s32 0, %v1791
        %v1793 = vrot.slane %v1788, %v1792
        %v1794 = vlaneseq
        %v1795 = vshrl.u32 %v1794, 7
        %v1796 = vsub.s32 1, %v1795
        %v1797 = vrot.slane %v1788, %v1796
        %v1800 = vmul.f32 %v1781, %v1793
        %v1801 = vmul.f32 %v1783, %v1797
        %v1802 = vadd.f32 %v1725, %v1800
        %v1803 = vadd.f32 %v1726, %v1801
        %1804 = vrot.lane.b32.xlu0 %v1646, 90
        %v1805 = vpop.permute.xlu0 %1804
        %1806 = vrot.lane.b32.xlu0 %v1647, 90
        %v1807 = vpop.permute.xlu0 %1806
        %vm1808 = vcmp.lt.s32.totalorder %v315, 90
        %v1809 = vsel %vm1808, %v1805, %v1807
        %v1810 = vsel %vm1808, %v1807, %v1805
        %s1811 = scalar_lea.vmem %s4, 8
        %v1812 = vld [vmem:[%s1811] sm:$0xf]
        %v1813 = vpack.c.bf16 %v1810, %v1810
        %v1814 = vpack.c.bf16 %v1809, %v1809
        %v1816 = vsel %vm322, %v1812, 0
        %v1819 = vsel %vm326, %v1813, 0
        %v1822 = vsel %vm326, %v1814, 0
        %1824 = vmatprep.subr.bf16.mxu0 %v1822
        %1825 = vmatpush1.bf16.msra.mxu0 %v1819
        %1826 = vmatprep.subr.bf16.mxu0 0
        %1827 = vmatpush1.bf16.msra.mxu0 0
        %1828 = vmatprep.subr.bf16.mxu0 0
        %1829 = vmatpush1.bf16.msra.mxu0 0
        %1830 = vmatprep.subr.bf16.mxu0 0
        %1831 = vmatpush1.bf16.msra.mxu0 0
        %1832 = vmatprep.subr.bf16.mxu0 0
        %1833 = vmatpush1.bf16.msra.mxu0 0
        %1834 = vmatprep.subr.bf16.mxu0 0
        %1835 = vmatpush1.bf16.msra.mxu0 0
        %1836 = vmatprep.subr.bf16.mxu0 0
        %1837 = vmatpush1.bf16.msra.mxu0 0
        %1838 = vmatprep.subr.bf16.mxu0 0
        %1839 = vmatpush1.bf16.msra.mxu0 0
        %1840 = vmatprep.subr.bf16.mxu0 0
        %1841 = vmatpush1.bf16.msra.mxu0 0
        %1842 = vmatprep.subr.bf16.mxu0 0
        %1843 = vmatpush1.bf16.msra.mxu0 0
        %1844 = vmatprep.subr.bf16.mxu0 0
        %1845 = vmatpush1.bf16.msra.mxu0 0
        %1846 = vmatprep.subr.bf16.mxu0 0
        %1847 = vmatpush1.bf16.msra.mxu0 0
        %1848 = vmatprep.subr.bf16.mxu0 0
        %1849 = vmatpush1.bf16.msra.mxu0 0
        %1850 = vmatprep.subr.bf16.mxu0 0
        %1851 = vmatpush1.bf16.msra.mxu0 0
        %1852 = vmatprep.subr.bf16.mxu0 0
        %1853 = vmatpush1.bf16.msra.mxu0 0
        %1854 = vmatprep.subr.bf16.mxu0 0
        %1855 = vmatpush1.bf16.msra.mxu0 0
        %1856 = vmatprep.mubr.bf16.mxu0 0
        %1857 = vmatmul.mubr.bf16.gmra.mrb[0].mxu0 %v1816
        %v1858 = vpop.f32.mrb[0].mxu0
        %v1859 = vadd.f32 0.0, %v1858
        %v1860 = vpop.f32.mrb[0].mxu0
        %v1861 = vadd.f32 0.0, %v1860
        %v1862 = vpop.f32.mrb[0].mxu0
        %v1863 = vpop.f32.mrb[0].mxu0
        %1864 = vdwg.mxu0
        %s1865 = scalar_lea.vmem %s1, 34
        %v1866 = vld [vmem:[%s1865] ss:$8 sm:$0x3]
        %v1868 = vlaneseq
        %v1869 = vshrl.u32 %v1868, 7
        %v1870 = vsub.s32 0, %v1869
        %v1871 = vrot.slane %v1866, %v1870
        %v1872 = vlaneseq
        %v1873 = vshrl.u32 %v1872, 7
        %v1874 = vsub.s32 1, %v1873
        %v1875 = vrot.slane %v1866, %v1874
        %v1878 = vmul.f32 %v1859, %v1871
        %v1879 = vmul.f32 %v1861, %v1875
        %v1880 = vadd.f32 %v1802, %v1878
        %v1881 = vadd.f32 %v1803, %v1879
        %1882 = vrot.lane.b32.xlu0 %v1646, 6
        %v1883 = vpop.permute.xlu0 %1882
        %1884 = vrot.lane.b32.xlu0 %v1647, 6
        %v1885 = vpop.permute.xlu0 %1884
        %vm1886 = vcmp.lt.s32.totalorder %v315, 6
        %v1887 = vsel %vm1886, %v1883, %v1885
        %v1888 = vsel %vm1886, %v1885, %v1883
        %s1889 = scalar_lea.vmem %s4, 12
        %v1890 = vld [vmem:[%s1889] sm:$0xf]
        %v1891 = vpack.c.bf16 %v1888, %v1888
        %v1892 = vpack.c.bf16 %v1887, %v1887
        %v1894 = vsel %vm322, %v1890, 0
        %v1897 = vsel %vm326, %v1891, 0
        %v1900 = vsel %vm326, %v1892, 0
        %1902 = vmatprep.subr.bf16.mxu0 %v1900
        %1903 = vmatpush1.bf16.msra.mxu0 %v1897
        %1904 = vmatprep.subr.bf16.mxu0 0
        %1905 = vmatpush1.bf16.msra.mxu0 0
        %1906 = vmatprep.subr.bf16.mxu0 0
        %1907 = vmatpush1.bf16.msra.mxu0 0
        %1908 = vmatprep.subr.bf16.mxu0 0
        %1909 = vmatpush1.bf16.msra.mxu0 0
        %1910 = vmatprep.subr.bf16.mxu0 0
        %1911 = vmatpush1.bf16.msra.mxu0 0
        %1912 = vmatprep.subr.bf16.mxu0 0
        %1913 = vmatpush1.bf16.msra.mxu0 0
        %1914 = vmatprep.subr.bf16.mxu0 0
        %1915 = vmatpush1.bf16.msra.mxu0 0
        %1916 = vmatprep.subr.bf16.mxu0 0
        %1917 = vmatpush1.bf16.msra.mxu0 0
        %1918 = vmatprep.subr.bf16.mxu0 0
        %1919 = vmatpush1.bf16.msra.mxu0 0
        %1920 = vmatprep.subr.bf16.mxu0 0
        %1921 = vmatpush1.bf16.msra.mxu0 0
        %1922 = vmatprep.subr.bf16.mxu0 0
        %1923 = vmatpush1.bf16.msra.mxu0 0
        %1924 = vmatprep.subr.bf16.mxu0 0
        %1925 = vmatpush1.bf16.msra.mxu0 0
        %1926 = vmatprep.subr.bf16.mxu0 0
        %1927 = vmatpush1.bf16.msra.mxu0 0
        %1928 = vmatprep.subr.bf16.mxu0 0
        %1929 = vmatpush1.bf16.msra.mxu0 0
        %1930 = vmatprep.subr.bf16.mxu0 0
        %1931 = vmatpush1.bf16.msra.mxu0 0
        %1932 = vmatprep.subr.bf16.mxu0 0
        %1933 = vmatpush1.bf16.msra.mxu0 0
        %1934 = vmatprep.mubr.bf16.mxu0 0
        %1935 = vmatmul.mubr.bf16.gmra.mrb[0].mxu0 %v1894
        %v1936 = vpop.f32.mrb[0].mxu0
        %v1937 = vadd.f32 0.0, %v1936
        %v1938 = vpop.f32.mrb[0].mxu0
        %v1939 = vadd.f32 0.0, %v1938
        %v1940 = vpop.f32.mrb[0].mxu0
        %v1941 = vpop.f32.mrb[0].mxu0
        %1942 = vdwg.mxu0
        %s1943 = scalar_lea.vmem %s1, 35
        %v1944 = vld [vmem:[%s1943] ss:$8 sm:$0x3]
        %v1946 = vlaneseq
        %v1947 = vshrl.u32 %v1946, 7
        %v1948 = vsub.s32 0, %v1947
        %v1949 = vrot.slane %v1944, %v1948
        %v1950 = vlaneseq
        %v1951 = vshrl.u32 %v1950, 7
        %v1952 = vsub.s32 1, %v1951
        %v1953 = vrot.slane %v1944, %v1952
        %v1956 = vmul.f32 %v1937, %v1949
        %v1957 = vmul.f32 %v1939, %v1953
        %v1958 = vadd.f32 %v1880, %v1956
        %v1959 = vadd.f32 %v1881, %v1957
        %s1960 = scalar_lea.vmem %s4, 16
        %v1961 = vld [vmem:[%s1960] sm:$0xf]
        %v1962 = vpack.c.bf16 %v1646, %v1646
        %v1963 = vpack.c.bf16 %v1647, %v1647
        %v1965 = vsel %vm322, %v1961, 0
        %v1968 = vsel %vm326, %v1962, 0
        %v1971 = vsel %vm326, %v1963, 0
        %1973 = vmatprep.subr.bf16.mxu0 %v1971
        %1974 = vmatpush1.bf16.msra.mxu0 %v1968
        %1975 = vmatprep.subr.bf16.mxu0 0
        %1976 = vmatpush1.bf16.msra.mxu0 0
        %1977 = vmatprep.subr.bf16.mxu0 0
        %1978 = vmatpush1.bf16.msra.mxu0 0
        %1979 = vmatprep.subr.bf16.mxu0 0
        %1980 = vmatpush1.bf16.msra.mxu0 0
        %1981 = vmatprep.subr.bf16.mxu0 0
        %1982 = vmatpush1.bf16.msra.mxu0 0
        %1983 = vmatprep.subr.bf16.mxu0 0
        %1984 = vmatpush1.bf16.msra.mxu0 0
        %1985 = vmatprep.subr.bf16.mxu0 0
        %1986 = vmatpush1.bf16.msra.mxu0 0
        %1987 = vmatprep.subr.bf16.mxu0 0
        %1988 = vmatpush1.bf16.msra.mxu0 0
        %1989 = vmatprep.subr.bf16.mxu0 0
        %1990 = vmatpush1.bf16.msra.mxu0 0
        %1991 = vmatprep.subr.bf16.mxu0 0
        %1992 = vmatpush1.bf16.msra.mxu0 0
        %1993 = vmatprep.subr.bf16.mxu0 0
        %1994 = vmatpush1.bf16.msra.mxu0 0
        %1995 = vmatprep.subr.bf16.mxu0 0
        %1996 = vmatpush1.bf16.msra.mxu0 0
        %1997 = vmatprep.subr.bf16.mxu0 0
        %1998 = vmatpush1.bf16.msra.mxu0 0
        %1999 = vmatprep.subr.bf16.mxu0 0
        %2000 = vmatpush1.bf16.msra.mxu0 0
        %2001 = vmatprep.subr.bf16.mxu0 0
        %2002 = vmatpush1.bf16.msra.mxu0 0
        %2003 = vmatprep.subr.bf16.mxu0 0
        %2004 = vmatpush1.bf16.msra.mxu0 0
        %2005 = vmatprep.mubr.bf16.mxu0 0
        %2006 = vmatmul.mubr.bf16.gmra.mrb[0].mxu0 %v1965
        %v2007 = vpop.f32.mrb[0].mxu0
        %v2008 = vadd.f32 0.0, %v2007
        %v2009 = vpop.f32.mrb[0].mxu0
        %v2010 = vadd.f32 0.0, %v2009
        %v2011 = vpop.f32.mrb[0].mxu0
        %v2012 = vpop.f32.mrb[0].mxu0
        %2013 = vdwg.mxu0
        %v2014 = vadd.f32 %v1958, %v2008
        %v2015 = vadd.f32 %v1959, %v2010
        %2016 = vrot.lane.b32.xlu0 %v1646, 122
        %v2017 = vpop.permute.xlu0 %2016
        %2018 = vrot.lane.b32.xlu0 %v1647, 122
        %v2019 = vpop.permute.xlu0 %2018
        %vm2020 = vcmp.lt.s32.totalorder %v315, 122
        %v2021 = vsel %vm2020, %v2017, %v2019
        %v2022 = vsel %vm2020, %v2019, %v2017
        %s2023 = scalar_lea.vmem %s4, 20
        %v2024 = vld [vmem:[%s2023] sm:$0xf]
        %v2025 = vpack.c.bf16 %v2021, %v2021
        %v2026 = vpack.c.bf16 %v2022, %v2022
        %v2028 = vsel %vm322, %v2024, 0
        %v2031 = vsel %vm326, %v2025, 0
        %v2034 = vsel %vm326, %v2026, 0
        %2036 = vmatprep.subr.bf16.mxu0 %v2034
        %2037 = vmatpush1.bf16.msra.mxu0 %v2031
        %2038 = vmatprep.subr.bf16.mxu0 0
        %2039 = vmatpush1.bf16.msra.mxu0 0
        %2040 = vmatprep.subr.bf16.mxu0 0
        %2041 = vmatpush1.bf16.msra.mxu0 0
        %2042 = vmatprep.subr.bf16.mxu0 0
        %2043 = vmatpush1.bf16.msra.mxu0 0
        %2044 = vmatprep.subr.bf16.mxu0 0
        %2045 = vmatpush1.bf16.msra.mxu0 0
        %2046 = vmatprep.subr.bf16.mxu0 0
        %2047 = vmatpush1.bf16.msra.mxu0 0
        %2048 = vmatprep.subr.bf16.mxu0 0
        %2049 = vmatpush1.bf16.msra.mxu0 0
        %2050 = vmatprep.subr.bf16.mxu0 0
        %2051 = vmatpush1.bf16.msra.mxu0 0
        %2052 = vmatprep.subr.bf16.mxu0 0
        %2053 = vmatpush1.bf16.msra.mxu0 0
        %2054 = vmatprep.subr.bf16.mxu0 0
        %2055 = vmatpush1.bf16.msra.mxu0 0
        %2056 = vmatprep.subr.bf16.mxu0 0
        %2057 = vmatpush1.bf16.msra.mxu0 0
        %2058 = vmatprep.subr.bf16.mxu0 0
        %2059 = vmatpush1.bf16.msra.mxu0 0
        %2060 = vmatprep.subr.bf16.mxu0 0
        %2061 = vmatpush1.bf16.msra.mxu0 0
        %2062 = vmatprep.subr.bf16.mxu0 0
        %2063 = vmatpush1.bf16.msra.mxu0 0
        %2064 = vmatprep.subr.bf16.mxu0 0
        %2065 = vmatpush1.bf16.msra.mxu0 0
        %2066 = vmatprep.subr.bf16.mxu0 0
        %2067 = vmatpush1.bf16.msra.mxu0 0
        %2068 = vmatprep.mubr.bf16.mxu0 0
        %2069 = vmatmul.mubr.bf16.gmra.mrb[0].mxu0 %v2028
        %v2070 = vpop.f32.mrb[0].mxu0
        %v2071 = vadd.f32 0.0, %v2070
        %v2072 = vpop.f32.mrb[0].mxu0
        %v2073 = vadd.f32 0.0, %v2072
        %v2074 = vpop.f32.mrb[0].mxu0
        %v2075 = vpop.f32.mrb[0].mxu0
        %2076 = vdwg.mxu0
        %s2077 = scalar_lea.vmem %s1, 36
        %v2078 = vld [vmem:[%s2077] ss:$8 sm:$0x3]
        %v2080 = vlaneseq
        %v2081 = vshrl.u32 %v2080, 7
        %v2082 = vsub.s32 0, %v2081
        %v2083 = vrot.slane %v2078, %v2082
        %v2084 = vlaneseq
        %v2085 = vshrl.u32 %v2084, 7
        %v2086 = vsub.s32 1, %v2085
        %v2087 = vrot.slane %v2078, %v2086
        %v2090 = vmul.f32 %v2071, %v2083
        %v2091 = vmul.f32 %v2073, %v2087
        %v2092 = vadd.f32 %v2014, %v2090
        %v2093 = vadd.f32 %v2015, %v2091
        %2094 = vrot.lane.b32.xlu0 %v1646, 38
        %v2095 = vpop.permute.xlu0 %2094
        %2096 = vrot.lane.b32.xlu0 %v1647, 38
        %v2097 = vpop.permute.xlu0 %2096
        %vm2098 = vcmp.lt.s32.totalorder %v315, 38
        %v2099 = vsel %vm2098, %v2095, %v2097
        %v2100 = vsel %vm2098, %v2097, %v2095
        %s2101 = scalar_lea.vmem %s4, 24
        %v2102 = vld [vmem:[%s2101] sm:$0xf]
        %v2103 = vpack.c.bf16 %v2099, %v2099
        %v2104 = vpack.c.bf16 %v2100, %v2100
        %v2106 = vsel %vm322, %v2102, 0
        %v2109 = vsel %vm326, %v2103, 0
        %v2112 = vsel %vm326, %v2104, 0
        %2114 = vmatprep.subr.bf16.mxu0 %v2112
        %2115 = vmatpush1.bf16.msra.mxu0 %v2109
        %2116 = vmatprep.subr.bf16.mxu0 0
        %2117 = vmatpush1.bf16.msra.mxu0 0
        %2118 = vmatprep.subr.bf16.mxu0 0
        %2119 = vmatpush1.bf16.msra.mxu0 0
        %2120 = vmatprep.subr.bf16.mxu0 0
        %2121 = vmatpush1.bf16.msra.mxu0 0
        %2122 = vmatprep.subr.bf16.mxu0 0
        %2123 = vmatpush1.bf16.msra.mxu0 0
        %2124 = vmatprep.subr.bf16.mxu0 0
        %2125 = vmatpush1.bf16.msra.mxu0 0
        %2126 = vmatprep.subr.bf16.mxu0 0
        %2127 = vmatpush1.bf16.msra.mxu0 0
        %2128 = vmatprep.subr.bf16.mxu0 0
        %2129 = vmatpush1.bf16.msra.mxu0 0
        %2130 = vmatprep.subr.bf16.mxu0 0
        %2131 = vmatpush1.bf16.msra.mxu0 0
        %2132 = vmatprep.subr.bf16.mxu0 0
        %2133 = vmatpush1.bf16.msra.mxu0 0
        %2134 = vmatprep.subr.bf16.mxu0 0
        %2135 = vmatpush1.bf16.msra.mxu0 0
        %2136 = vmatprep.subr.bf16.mxu0 0
        %2137 = vmatpush1.bf16.msra.mxu0 0
        %2138 = vmatprep.subr.bf16.mxu0 0
        %2139 = vmatpush1.bf16.msra.mxu0 0
        %2140 = vmatprep.subr.bf16.mxu0 0
        %2141 = vmatpush1.bf16.msra.mxu0 0
        %2142 = vmatprep.subr.bf16.mxu0 0
        %2143 = vmatpush1.bf16.msra.mxu0 0
        %2144 = vmatprep.subr.bf16.mxu0 0
        %2145 = vmatpush1.bf16.msra.mxu0 0
        %2146 = vmatprep.mubr.bf16.mxu0 0
        %2147 = vmatmul.mubr.bf16.gmra.mrb[0].mxu0 %v2106
        %v2148 = vpop.f32.mrb[0].mxu0
        %v2149 = vadd.f32 0.0, %v2148
        %v2150 = vpop.f32.mrb[0].mxu0
        %v2151 = vadd.f32 0.0, %v2150
        %v2152 = vpop.f32.mrb[0].mxu0
        %v2153 = vpop.f32.mrb[0].mxu0
        %2154 = vdwg.mxu0
        %s2155 = scalar_lea.vmem %s1, 37
        %v2156 = vld [vmem:[%s2155] ss:$8 sm:$0x3]
        %v2158 = vlaneseq
        %v2159 = vshrl.u32 %v2158, 7
        %v2160 = vsub.s32 0, %v2159
        %v2161 = vrot.slane %v2156, %v2160
        %v2162 = vlaneseq
        %v2163 = vshrl.u32 %v2162, 7
        %v2164 = vsub.s32 1, %v2163
        %v2165 = vrot.slane %v2156, %v2164
        %v2168 = vmul.f32 %v2149, %v2161
        %v2169 = vmul.f32 %v2151, %v2165
        %v2170 = vadd.f32 %v2092, %v2168
        %v2171 = vadd.f32 %v2093, %v2169
        %2172 = vrot.lane.b32.xlu0 %v1646, 32
        %v2173 = vpop.permute.xlu0 %2172
        %2174 = vrot.lane.b32.xlu0 %v1647, 32
        %v2175 = vpop.permute.xlu0 %2174
        %v2176 = vsel %vm392, %v2173, %v2175
        %v2177 = vsel %vm392, %v2175, %v2173
        %s2178 = scalar_lea.vmem %s4, 28
        %v2179 = vld [vmem:[%s2178] sm:$0xf]
        %v2180 = vpack.c.bf16 %v2176, %v2176
        %v2181 = vpack.c.bf16 %v2177, %v2177
        %v2183 = vsel %vm322, %v2179, 0
        %v2186 = vsel %vm326, %v2180, 0
        %v2189 = vsel %vm326, %v2181, 0
        %2191 = vmatprep.subr.bf16.mxu0 %v2189
        %2192 = vmatpush1.bf16.msra.mxu0 %v2186
        %2193 = vmatprep.subr.bf16.mxu0 0
        %2194 = vmatpush1.bf16.msra.mxu0 0
        %2195 = vmatprep.subr.bf16.mxu0 0
        %2196 = vmatpush1.bf16.msra.mxu0 0
        %2197 = vmatprep.subr.bf16.mxu0 0
        %2198 = vmatpush1.bf16.msra.mxu0 0
        %2199 = vmatprep.subr.bf16.mxu0 0
        %2200 = vmatpush1.bf16.msra.mxu0 0
        %2201 = vmatprep.subr.bf16.mxu0 0
        %2202 = vmatpush1.bf16.msra.mxu0 0
        %2203 = vmatprep.subr.bf16.mxu0 0
        %2204 = vmatpush1.bf16.msra.mxu0 0
        %2205 = vmatprep.subr.bf16.mxu0 0
        %2206 = vmatpush1.bf16.msra.mxu0 0
        %2207 = vmatprep.subr.bf16.mxu0 0
        %2208 = vmatpush1.bf16.msra.mxu0 0
        %2209 = vmatprep.subr.bf16.mxu0 0
        %2210 = vmatpush1.bf16.msra.mxu0 0
        %2211 = vmatprep.subr.bf16.mxu0 0
        %2212 = vmatpush1.bf16.msra.mxu0 0
        %2213 = vmatprep.subr.bf16.mxu0 0
        %2214 = vmatpush1.bf16.msra.mxu0 0
        %2215 = vmatprep.subr.bf16.mxu0 0
        %2216 = vmatpush1.bf16.msra.mxu0 0
        %2217 = vmatprep.subr.bf16.mxu0 0
        %2218 = vmatpush1.bf16.msra.mxu0 0
        %2219 = vmatprep.subr.bf16.mxu0 0
        %2220 = vmatpush1.bf16.msra.mxu0 0
        %2221 = vmatprep.subr.bf16.mxu0 0
        %2222 = vmatpush1.bf16.msra.mxu0 0
        %2223 = vmatprep.mubr.bf16.mxu0 0
        %2224 = vmatmul.mubr.bf16.gmra.mrb[0].mxu0 %v2183
        %v2225 = vpop.f32.mrb[0].mxu0
        %v2226 = vadd.f32 0.0, %v2225
        %v2227 = vpop.f32.mrb[0].mxu0
        %v2228 = vadd.f32 0.0, %v2227
        %v2229 = vpop.f32.mrb[0].mxu0
        %v2230 = vpop.f32.mrb[0].mxu0
        %2231 = vdwg.mxu0
        %s2232 = scalar_lea.vmem %s1, 38
        %v2233 = vld [vmem:[%s2232] ss:$8 sm:$0x3]
        %v2235 = vlaneseq
        %v2236 = vshrl.u32 %v2235, 7
        %v2237 = vsub.s32 0, %v2236
        %v2238 = vrot.slane %v2233, %v2237
        %v2239 = vlaneseq
        %v2240 = vshrl.u32 %v2239, 7
        %v2241 = vsub.s32 1, %v2240
        %v2242 = vrot.slane %v2233, %v2241
        %v2245 = vmul.f32 %v2226, %v2238
        %v2246 = vmul.f32 %v2228, %v2242
        %v2247 = vadd.f32 %v2170, %v2245
        %v2248 = vadd.f32 %v2171, %v2246
        %2249 = vrot.lane.b32.xlu0 %v1646, 26
        %v2250 = vpop.permute.xlu0 %2249
        %2251 = vrot.lane.b32.xlu0 %v1647, 26
        %v2252 = vpop.permute.xlu0 %2251
        %vm2253 = vcmp.lt.s32.totalorder %v315, 26
        %v2254 = vsel %vm2253, %v2250, %v2252
        %v2255 = vsel %vm2253, %v2252, %v2250
        %s2256 = scalar_lea.vmem %s4, 32
        %v2257 = vld [vmem:[%s2256] sm:$0xf]
        %v2258 = vpack.c.bf16 %v2254, %v2254
        %v2259 = vpack.c.bf16 %v2255, %v2255
        %v2261 = vsel %vm322, %v2257, 0
        %v2264 = vsel %vm326, %v2258, 0
        %v2267 = vsel %vm326, %v2259, 0
        %2269 = vmatprep.subr.bf16.mxu0 %v2267
        %2270 = vmatpush1.bf16.msra.mxu0 %v2264
        %2271 = vmatprep.subr.bf16.mxu0 0
        %2272 = vmatpush1.bf16.msra.mxu0 0
        %2273 = vmatprep.subr.bf16.mxu0 0
        %2274 = vmatpush1.bf16.msra.mxu0 0
        %2275 = vmatprep.subr.bf16.mxu0 0
        %2276 = vmatpush1.bf16.msra.mxu0 0
        %2277 = vmatprep.subr.bf16.mxu0 0
        %2278 = vmatpush1.bf16.msra.mxu0 0
        %2279 = vmatprep.subr.bf16.mxu0 0
        %2280 = vmatpush1.bf16.msra.mxu0 0
        %2281 = vmatprep.subr.bf16.mxu0 0
        %2282 = vmatpush1.bf16.msra.mxu0 0
        %2283 = vmatprep.subr.bf16.mxu0 0
        %2284 = vmatpush1.bf16.msra.mxu0 0
        %2285 = vmatprep.subr.bf16.mxu0 0
        %2286 = vmatpush1.bf16.msra.mxu0 0
        %2287 = vmatprep.subr.bf16.mxu0 0
        %2288 = vmatpush1.bf16.msra.mxu0 0
        %2289 = vmatprep.subr.bf16.mxu0 0
        %2290 = vmatpush1.bf16.msra.mxu0 0
        %2291 = vmatprep.subr.bf16.mxu0 0
        %2292 = vmatpush1.bf16.msra.mxu0 0
        %2293 = vmatprep.subr.bf16.mxu0 0
        %2294 = vmatpush1.bf16.msra.mxu0 0
        %2295 = vmatprep.subr.bf16.mxu0 0
        %2296 = vmatpush1.bf16.msra.mxu0 0
        %2297 = vmatprep.subr.bf16.mxu0 0
        %2298 = vmatpush1.bf16.msra.mxu0 0
        %2299 = vmatprep.subr.bf16.mxu0 0
        %2300 = vmatpush1.bf16.msra.mxu0 0
        %2301 = vmatprep.mubr.bf16.mxu0 0
        %2302 = vmatmul.mubr.bf16.gmra.mrb[0].mxu0 %v2261
        %v2303 = vpop.f32.mrb[0].mxu0
        %v2304 = vadd.f32 0.0, %v2303
        %v2305 = vpop.f32.mrb[0].mxu0
        %v2306 = vadd.f32 0.0, %v2305
        %v2307 = vpop.f32.mrb[0].mxu0
        %v2308 = vpop.f32.mrb[0].mxu0
        %2309 = vdwg.mxu0
        %s2310 = scalar_lea.vmem %s1, 39
        %v2311 = vld [vmem:[%s2310] ss:$8 sm:$0x3]
        %v2313 = vlaneseq
        %v2314 = vshrl.u32 %v2313, 7
        %v2315 = vsub.s32 0, %v2314
        %v2316 = vrot.slane %v2311, %v2315
        %v2317 = vlaneseq
        %v2318 = vshrl.u32 %v2317, 7
        %v2319 = vsub.s32 1, %v2318
        %v2320 = vrot.slane %v2311, %v2319
        %v2323 = vmul.f32 %v2304, %v2316
        %v2324 = vmul.f32 %v2306, %v2320
        %v2325 = vadd.f32 %v2247, %v2323
        %v2326 = vadd.f32 %v2248, %v2324
        %v2327 = vld [vmem:[%s7] sm:$0xff]
        %2329 = vset.pattern.permute.xlu0 0
        %2330 = vperm.xlu0 %2329, %v2327
        %v2331 = vpop.permute.xlu0 %2330
        %v2333 = vadd.f32 %v2325, %v2331
        %v2334 = vadd.f32 %v2326, %v2331
        %v2335 = vmul.f32 %v2333, 0.01
        %v2336 = vmul.f32 %v2334, 0.01
        %v2337 = vmax.f32 %v2333, %v2335
        %v2338 = vmax.f32 %v2334, %v2336
        %v2339 = vadd.f32 %v2333, %v2337
        %v2340 = vadd.f32 %v2334, %v2338
        %v2341 = vadd.f32 %v1650, %v2339
        %v2342 = vadd.f32 %v1651, %v2340
        %2343 = vst [vmem:[%s299] sm:$0xff] %v2341
        %2344 = vst [vmem:[%s299 + $0x8] sm:$0xff] %v2342
        %s2345 = sand.u32 %s203, 1
        %s2346 = scalar_lea.sflag [#allocation3], %s2345
        %s2347 = sand.u32 %s203, 1
        %s2348 = smul.addr %s2347, 16
        %s2349 = scalar_lea.vmem [#allocation2], %s2348
        // Predicated region
        $region53: #{tpu_custom_call.1} parent=51 // pred_check
          %p2350 = pneg %p213
        $region54: #{tpu_custom_call.1} parent=51 // pred_check_branch
          %2352 = sbr.rel (%p2350) target = $region56
        $region55: #{tpu_custom_call.1} parent=51 // pred_region
          %s2353 = smul.u32 2, %s22
          %s2355 = ssub.s32 256, 256
          %2356 = vsyncadd %s2346, %s2355
          %s2357 = smul.addr %s2353, 128
          %s2358 = scalar_lea.hbm %s8, %s2357
          %s2360 = sshll.u32 %s2349, 4
          %s2361 = int_to_ptr.vmem [resolvable:$true] %s2360
          %2363 = dma.vmem_to_hbm [thread:$0]  %s2361, 256, %s2358, %s2346
        $region56: #{tpu_custom_call.1} parent=51 // pred_fallthru
          _
      $region52: #{tpu_custom_call.1} parent=5 // pred_fallthru
        _
      %p2364 = scmp.le.s32.totalorder 2, %s17
      // Predicated region
      $region57: #{tpu_custom_call.1} parent=5 // pred_check
        %p2365 = pneg %p2364
      $region58: #{tpu_custom_call.1} parent=5 // pred_check_branch
        %2367 = sbr.rel (%p2365) target = $region60
      $region59: #{tpu_custom_call.1} parent=5 // pred_region
        %s2368 = ssub.s32 %s17, 2
        // Predicated region
        $region61: #{tpu_custom_call.1} parent=59 // pred_check
          %p2369 = pneg %p219
        $region62: #{tpu_custom_call.1} parent=59 // pred_check_branch
          %2371 = sbr.rel (%p2369) target = $region64
        $region63: #{tpu_custom_call.1} parent=59 // pred_region
          %s2372 = sand.u32 %s204, 1
          %s2373 = scalar_lea.sflag [#allocation3], %s2372
          %s2374 = sand.u32 %s204, 1
          %s2375 = smul.addr %s2374, 16
          %s2376 = scalar_lea.vmem [#allocation2], %s2375
          %2377 = dma.done %s2373, 256
        $region64: #{tpu_custom_call.1} parent=59 // pred_fallthru
          _
      $region60: #{tpu_custom_call.1} parent=5 // pred_fallthru
        _
    $region6: #{tpu_custom_call.1} parent=1 // loop_footer
      %s21 = sadd.s32 1, %s17
    $region7: #{tpu_custom_call.1} parent=1 // loop_footer_branch
      %16 = sbr.rel target = $region3
    $region8: #{tpu_custom_call.1} parent=1 // loop_exit
      _
    %2378 = vsyncpa [#allocation3], 1
    %s2379 = scalar_lea.sflag [#allocation3], 1
    %2380 = vsyncpa %s2379, 1

</llo_original>
